<compile_context>
chip_gen: v7x
topology: tpu7x:2x2x1
jax: 0.10.0
libtpu: 0.0.40
codegen_flags: <defaults>
</compile_context>

<pallas_src>
import jax
import jax.numpy as jnp
from jax import lax
from jax.experimental import pallas as pl
from jax.experimental.pallas import tpu as pltpu


def _round_up(n, m):
    return ((n + m - 1) // m) * m


# ---------------------------------------------------------------------------
# Kernel
# ---------------------------------------------------------------------------
def _mlp_steer_kernel(x_ref,
                      w1_ref, b1_ref,
                      w2_ref, b2_ref,
                      w3_ref, b3_ref,
                      w4_ref, b4_ref,
                      o_ref):
    # x_ref:  [TILE_B, F]     bf16  (natural [batch, feature] layout, streamed)
    # wN_ref: [out, in]       bf16  (native nn.Linear layout, VMEM-resident)
    # bN_ref: [out, 1]        f32   column biases (broadcast across lanes)
    # o_ref:  [O_pad, TILE_B] f32   lane-dense batch-on-lanes output slab
    x = x_ref[...]

    # Layer 1 flips to batch-on-lanes on the MXU itself:
    #   w1 [H, F] . x [TILE_B, F]^T -> [H, TILE_B]   ("NT" contraction)
    y = lax.dot_general(w1_ref[...], x,
                        dimension_numbers=(((1,), (1,)), ((), ())),
                        preferred_element_type=jnp.float32) + b1_ref[...]
    a = jnp.maximum(y, 0.0).astype(jnp.bfloat16)

    y = jnp.dot(w2_ref[...], a, preferred_element_type=jnp.float32) + b2_ref[...]
    a = jnp.maximum(y, 0.0).astype(jnp.bfloat16)

    y = jnp.dot(w3_ref[...], a, preferred_element_type=jnp.float32) + b3_ref[...]
    a = jnp.maximum(y, 0.0).astype(jnp.bfloat16)

    y = jnp.dot(w4_ref[...], a, preferred_element_type=jnp.float32) + b4_ref[...]
    o_ref[...] = jnp.tanh(y).astype(o_ref.dtype)


# ---------------------------------------------------------------------------
# Parameter preparation (PyTorch layout -> kernel-resident layout)
# ---------------------------------------------------------------------------
def prepare_params(params):
    """Pad + cast PyTorch-layout params (weights [out, in], biases [out]) into
    the kernel-resident layout: bf16 zero-padded weights, f32 column biases.

    Hidden is padded to 128 (one full vreg / MXU pass) — do NOT pad to 256 for
    v6e/v7x's wider MXU: the kernel is overhead-bound, not MXU-bound, and that
    would only quadruple zero-FLOPs and double the resident footprint.
    """
    H = _round_up(params["w1"].shape[0], 128)   # hidden width -> 128 lanes
    O = _round_up(params["w4"].shape[0], 8)     # output -> sublane aligned
    F = params["w1"].shape[1]

    def pad_w(w, rows, cols):
        buf = jnp.zeros((rows, cols), jnp.float32)
        return buf.at[: w.shape[0], : w.shape[1]].set(w).astype(jnp.bfloat16)

    def pad_b(b, rows):
        buf = jnp.zeros((rows, 1), jnp.float32)
        return buf.at[: b.shape[0], 0].set(b)

    p = {
        "w1": pad_w(params["w1"], H, F), "b1": pad_b(params["b1"], H),
        "w2": pad_w(params["w2"], H, H), "b2": pad_b(params["b2"], H),
        "w3": pad_w(params["w3"], H, H), "b3": pad_b(params["b3"], H),
        "w4": pad_w(params["w4"], O, H), "b4": pad_b(params["b4"], O),
    }
    return p, H, O


# ---------------------------------------------------------------------------
# Forward
# ---------------------------------------------------------------------------
def _xla_forward(x, params):
    # Tiny-batch path: four fused XLA matmuls beat any hand-written kernel at
    # controller-sized batches (the kernel would be pure launch/DMA overhead).
    y = jnp.maximum(x @ params["w1"].T + params["b1"], 0.0)
    y = jnp.maximum(y @ params["w2"].T + params["b2"], 0.0)
    y = jnp.maximum(y @ params["w3"].T + params["b3"], 0.0)
    return jnp.tanh(y @ params["w4"].T + params["b4"])


def torcs_mlp_steer_forward(x, params, prepared=None, *, tile_b=None,
                            min_pallas_batch=512):
    """Forward pass of torcs_mlp_NN_steer.

    x: [B, num_features] (f32 or bf16), params: PyTorch-layout dict
    (wN [out, in], bN [out]). Returns [B, num_output] float32.
    """
    B, F = x.shape
    num_output = params["w4"].shape[0]

    # Controller-sized batches: bypass Pallas entirely.
    if B < min_pallas_batch:
        return _xla_forward(x.astype(jnp.float32), params)

    if prepared is None:
        prepared = prepare_params(params)
    p, H_pad, O_pad = prepared

    # Fat batch tiles amortize the ~0.35us/grid-step pipeline overhead; target
    # exactly 2 grid steps (keeps v7x's second TensorCore busy, costs v5e/v6e
    # only one extra step), capped at 4096 lanes per tile.
    if tile_b is None:
        tile_b = min(max(_round_up(pl.cdiv(B, 2), 128), 128), 4096)
    else:
        tile_b = max(_round_up(tile_b, 128), 128)

    n_tiles = pl.cdiv(B, tile_b)
    B_out = n_tiles * tile_b          # output slab is padded; sliced below

    # Stream x as bf16 and in its natural [B, F] layout: no HBM transpose/pad
    # pass over x. The tail of the last tile is a Pallas partial block — its
    # padded columns never mix with real batch elements and are sliced away.
    x_bf = x.astype(jnp.bfloat16)

    const = lambda i: (0, 0)

    flops = 2 * B_out * (F * H_pad + 2 * H_pad * H_pad + H_pad * O_pad)
    bytes_accessed = (int(x_bf.size) * 2 + O_pad * B_out * 4
                      + sum(int(v.size) * v.dtype.itemsize for v in p.values()))
    cost = pl.CostEstimate(flops=flops, transcendentals=B_out * O_pad,
                           bytes_accessed=bytes_accessed)

    # ~8 live [128, tile_b] f32/bf16 temporaries + double-buffered x/out tiles
    # + resident weights; keep headroom under v7x's 64 MiB physical VMEM.
    vmem_limit = int(min(max(8 * 512 * tile_b + (6 << 20), 32 << 20), 56 << 20))

    out_t = pl.pallas_call(
        _mlp_steer_kernel,
        out_shape=jax.ShapeDtypeStruct((O_pad, B_out), jnp.float32),
        grid=(n_tiles,),
        in_specs=[
            pl.BlockSpec((tile_b, F), lambda i: (i, 0)),   # streamed batch tile
            pl.BlockSpec((H_pad, F), const),               # weights/biases:
            pl.BlockSpec((H_pad, 1), const),               # constant index_map
            pl.BlockSpec((H_pad, H_pad), const),           # -> fetched once,
            pl.BlockSpec((H_pad, 1), const),               # VMEM-resident for
            pl.BlockSpec((H_pad, H_pad), const),           # the whole grid.
            pl.BlockSpec((H_pad, 1), const),
            pl.BlockSpec((O_pad, H_pad), const),
            pl.BlockSpec((O_pad, 1), const),
        ],
        out_specs=pl.BlockSpec((O_pad, tile_b), lambda i: (0, i)),
        compiler_params=pltpu.CompilerParams(
            dimension_semantics=("parallel",),
            vmem_limit_bytes=vmem_limit,
        ),
        cost_estimate=cost,
    )(x_bf, p["w1"], p["b1"], p["w2"], p["b2"],
      p["w3"], p["b3"], p["w4"], p["b4"])

    # Un-pad (padded output rows are tanh(0)=0, padded batch columns come from
    # the masked tail tile) and return in the PyTorch [B, num_output] layout.
    return out_t[:num_output, :B].T


# ---------------------------------------------------------------------------
# Init + reference (nn.Linear semantics)
# ---------------------------------------------------------------------------
def init_params(key, num_features, num_nodes_hidden, num_output):
    """nn.Linear-style init: weights [out, in], biases [out], U(±1/sqrt(fan_in))."""
    dims = [(num_nodes_hidden, num_features),
            (num_nodes_hidden, num_nodes_hidden),
            (num_nodes_hidden, num_nodes_hidden),
            (num_output, num_nodes_hidden)]
    params = {}
    for i, (fan_out, fan_in) in enumerate(dims, start=1):
        key, kw, kb = jax.random.split(key, 3)
        bound = 1.0 / (fan_in ** 0.5)
        params[f"w{i}"] = jax.random.uniform(
            kw, (fan_out, fan_in), jnp.float32, minval=-bound, maxval=bound)
        params[f"b{i}"] = jax.random.uniform(
            kb, (fan_out,), jnp.float32, minval=-bound, maxval=bound)
    return params


def reference_forward(x, params):
    y = jnp.maximum(x @ params["w1"].T + params["b1"], 0.0)
    y = jnp.maximum(y @ params["w2"].T + params["b2"], 0.0)
    y = jnp.maximum(y @ params["w3"].T + params["b3"], 0.0)
    return jnp.tanh(y @ params["w4"].T + params["b4"])


if __name__ == "__main__":
    # Steering-head shapes consistent with the module; batch is a non-multiple
    # of the tile to exercise the partial last block and the batch-tail slice.
    batch = 1000
    num_features = 32
    num_nodes_hidden = 64
    num_output = 1

    key = jax.random.PRNGKey(0)
    key, kx = jax.random.split(key)
    x = jax.random.normal(kx, (batch, num_features), jnp.float32)
    params = init_params(key, num_features, num_nodes_hidden, num_output)
    prepared = prepare_params(params)

    out = torcs_mlp_steer_forward(x, params, prepared)
    out = jax.block_until_ready(out)

    ref = reference_forward(x, params)
    assert out.shape == (batch, num_output)
    # bf16-streamed x + bf16 MXU dots (f32 accumulation) -> loose tolerance.
    assert jnp.allclose(out, ref, atol=3e-2, rtol=3e-2), \
        "Pallas output mismatch vs reference"

    # Tiny controller-sized batch takes the fused-XLA bypass path.
    out_small = jax.block_until_ready(torcs_mlp_steer_forward(x[:8], params, prepared))
    assert out_small.shape == (8, num_output)
    assert jnp.allclose(out_small, ref[:8], atol=1e-5, rtol=1e-5), \
        "XLA bypass output mismatch vs reference"

    print("KERNEL_OK")
</pallas_src>

<mosaic_0001>
module attributes {stable_mosaic.version = 11 : i64} {
  func.func @_mlp_steer_kernel(%arg0: i32, %arg1: memref<512x32xbf16, #tpu.memory_space<vmem>>, %arg2: memref<128x32xbf16, #tpu.memory_space<vmem>>, %arg3: memref<128x1xf32, #tpu.memory_space<vmem>>, %arg4: memref<128x128xbf16, #tpu.memory_space<vmem>>, %arg5: memref<128x1xf32, #tpu.memory_space<vmem>>, %arg6: memref<128x128xbf16, #tpu.memory_space<vmem>>, %arg7: memref<128x1xf32, #tpu.memory_space<vmem>>, %arg8: memref<8x128xbf16, #tpu.memory_space<vmem>>, %arg9: memref<8x1xf32, #tpu.memory_space<vmem>>, %arg10: memref<8x512xf32, #tpu.memory_space<vmem>>) attributes {dimension_semantics = [#tpu.dimension_semantics<parallel>], iteration_bounds = array<i64: 2>, scalar_prefetch = 0 : i64, scratch_operands = 0 : i64, tpu.core_type = #tpu.core_type<tc>, window_params = [{transform_indices = @transform_0, window_bounds = array<i64: 512, 32>}, {pipeline_mode = #tpu.pipeline_mode<synchronous>, transform_indices = @transform_1, window_bounds = array<i64: 128, 32>}, {pipeline_mode = #tpu.pipeline_mode<synchronous>, transform_indices = @transform_2, window_bounds = array<i64: 128, 1>}, {pipeline_mode = #tpu.pipeline_mode<synchronous>, transform_indices = @transform_3, window_bounds = array<i64: 128, 128>}, {pipeline_mode = #tpu.pipeline_mode<synchronous>, transform_indices = @transform_4, window_bounds = array<i64: 128, 1>}, {pipeline_mode = #tpu.pipeline_mode<synchronous>, transform_indices = @transform_5, window_bounds = array<i64: 128, 128>}, {pipeline_mode = #tpu.pipeline_mode<synchronous>, transform_indices = @transform_6, window_bounds = array<i64: 128, 1>}, {pipeline_mode = #tpu.pipeline_mode<synchronous>, transform_indices = @transform_7, window_bounds = array<i64: 8, 128>}, {pipeline_mode = #tpu.pipeline_mode<synchronous>, transform_indices = @transform_8, window_bounds = array<i64: 8, 1>}, {transform_indices = @transform_9, window_bounds = array<i64: 8, 512>}]} {
    %c0 = arith.constant 0 : index
    %c0_0 = arith.constant 0 : index
    %0 = vector.load %arg1[%c0, %c0_0] : memref<512x32xbf16, #tpu.memory_space<vmem>>, vector<512x32xbf16>
    %c0_1 = arith.constant 0 : index
    %c0_2 = arith.constant 0 : index
    %1 = vector.load %arg2[%c0_1, %c0_2] : memref<128x32xbf16, #tpu.memory_space<vmem>>, vector<128x32xbf16>
    %cst = arith.constant dense<0.000000e+00> : vector<128x512xf32>
    %2 = tpu.matmul %1, %0, %cst {dimension_numbers = #tpu.dot_dimension_numbers<[1], [1], [0], [0], [0, 0, 1, 0], [], []>} : vector<128x32xbf16>, vector<512x32xbf16>, vector<128x512xf32> -> vector<128x512xf32>
    %c0_3 = arith.constant 0 : index
    %c0_4 = arith.constant 0 : index
    %3 = vector.load %arg3[%c0_3, %c0_4] : memref<128x1xf32, #tpu.memory_space<vmem>>, vector<128x1xf32>
    %4 = vector.broadcast %3 : vector<128x1xf32> to vector<128x512xf32>
    %5 = arith.addf %2, %4 : vector<128x512xf32>
    %cst_5 = arith.constant 0.000000e+00 : f32
    %6 = vector.broadcast %cst_5 : f32 to vector<128x512xf32>
    %7 = arith.maximumf %5, %6 : vector<128x512xf32>
    %8 = arith.truncf %7 : vector<128x512xf32> to vector<128x512xbf16>
    %c0_6 = arith.constant 0 : index
    %c0_7 = arith.constant 0 : index
    %9 = vector.load %arg4[%c0_6, %c0_7] : memref<128x128xbf16, #tpu.memory_space<vmem>>, vector<128x128xbf16>
    %cst_8 = arith.constant dense<0.000000e+00> : vector<128x512xf32>
    %10 = tpu.matmul %9, %8, %cst_8 {dimension_numbers = #tpu.dot_dimension_numbers<[1], [0], [0], [1], [0, 0, 1, 1], [], []>} : vector<128x128xbf16>, vector<128x512xbf16>, vector<128x512xf32> -> vector<128x512xf32>
    %c0_9 = arith.constant 0 : index
    %c0_10 = arith.constant 0 : index
    %11 = vector.load %arg5[%c0_9, %c0_10] : memref<128x1xf32, #tpu.memory_space<vmem>>, vector<128x1xf32>
    %12 = vector.broadcast %11 : vector<128x1xf32> to vector<128x512xf32>
    %13 = arith.addf %10, %12 : vector<128x512xf32>
    %cst_11 = arith.constant 0.000000e+00 : f32
    %14 = vector.broadcast %cst_11 : f32 to vector<128x512xf32>
    %15 = arith.maximumf %13, %14 : vector<128x512xf32>
    %16 = arith.truncf %15 : vector<128x512xf32> to vector<128x512xbf16>
    %c0_12 = arith.constant 0 : index
    %c0_13 = arith.constant 0 : index
    %17 = vector.load %arg6[%c0_12, %c0_13] : memref<128x128xbf16, #tpu.memory_space<vmem>>, vector<128x128xbf16>
    %cst_14 = arith.constant dense<0.000000e+00> : vector<128x512xf32>
    %18 = tpu.matmul %17, %16, %cst_14 {dimension_numbers = #tpu.dot_dimension_numbers<[1], [0], [0], [1], [0, 0, 1, 1], [], []>} : vector<128x128xbf16>, vector<128x512xbf16>, vector<128x512xf32> -> vector<128x512xf32>
    %c0_15 = arith.constant 0 : index
    %c0_16 = arith.constant 0 : index
    %19 = vector.load %arg7[%c0_15, %c0_16] : memref<128x1xf32, #tpu.memory_space<vmem>>, vector<128x1xf32>
    %20 = vector.broadcast %19 : vector<128x1xf32> to vector<128x512xf32>
    %21 = arith.addf %18, %20 : vector<128x512xf32>
    %cst_17 = arith.constant 0.000000e+00 : f32
    %22 = vector.broadcast %cst_17 : f32 to vector<128x512xf32>
    %23 = arith.maximumf %21, %22 : vector<128x512xf32>
    %24 = arith.truncf %23 : vector<128x512xf32> to vector<128x512xbf16>
    %c0_18 = arith.constant 0 : index
    %c0_19 = arith.constant 0 : index
    %25 = vector.load %arg8[%c0_18, %c0_19] : memref<8x128xbf16, #tpu.memory_space<vmem>>, vector<8x128xbf16>
    %cst_20 = arith.constant dense<0.000000e+00> : vector<8x512xf32>
    %26 = tpu.matmul %25, %24, %cst_20 {dimension_numbers = #tpu.dot_dimension_numbers<[1], [0], [0], [1], [0, 0, 1, 1], [], []>} : vector<8x128xbf16>, vector<128x512xbf16>, vector<8x512xf32> -> vector<8x512xf32>
    %c0_21 = arith.constant 0 : index
    %c0_22 = arith.constant 0 : index
    %27 = vector.load %arg9[%c0_21, %c0_22] : memref<8x1xf32, #tpu.memory_space<vmem>>, vector<8x1xf32>
    %28 = vector.broadcast %27 : vector<8x1xf32> to vector<8x512xf32>
    %29 = arith.addf %26, %28 : vector<8x512xf32>
    %30 = math.tanh %29 : vector<8x512xf32>
    %c0_23 = arith.constant 0 : index
    %c0_24 = arith.constant 0 : index
    %31 = vector.load %arg10[%c0_23, %c0_24] : memref<8x512xf32, #tpu.memory_space<vmem>>, vector<8x512xf32>
    tpu.vector_store %arg10[%c0_23, %c0_24], %30 {strides = array<i32>} : memref<8x512xf32, #tpu.memory_space<vmem>>, vector<8x512xf32>,
    return
  }
  func.func @transform_0(%arg0: i32) -> (i32, i32) {
    %c0_i32 = arith.constant 0 : i32
    %c0_i32_0 = arith.constant 0 : i32
    return %arg0, %c0_i32 : i32, i32
  }
  func.func @transform_1(%arg0: i32) -> (i32, i32) {
    %c0_i32 = arith.constant 0 : i32
    %c0_i32_0 = arith.constant 0 : i32
    %c0_i32_1 = arith.constant 0 : i32
    return %c0_i32, %c0_i32_0 : i32, i32
  }
  func.func @transform_2(%arg0: i32) -> (i32, i32) {
    %c0_i32 = arith.constant 0 : i32
    %c0_i32_0 = arith.constant 0 : i32
    %c0_i32_1 = arith.constant 0 : i32
    return %c0_i32, %c0_i32_0 : i32, i32
  }
  func.func @transform_3(%arg0: i32) -> (i32, i32) {
    %c0_i32 = arith.constant 0 : i32
    %c0_i32_0 = arith.constant 0 : i32
    %c0_i32_1 = arith.constant 0 : i32
    return %c0_i32, %c0_i32_0 : i32, i32
  }
  func.func @transform_4(%arg0: i32) -> (i32, i32) {
    %c0_i32 = arith.constant 0 : i32
    %c0_i32_0 = arith.constant 0 : i32
    %c0_i32_1 = arith.constant 0 : i32
    return %c0_i32, %c0_i32_0 : i32, i32
  }
  func.func @transform_5(%arg0: i32) -> (i32, i32) {
    %c0_i32 = arith.constant 0 : i32
    %c0_i32_0 = arith.constant 0 : i32
    %c0_i32_1 = arith.constant 0 : i32
    return %c0_i32, %c0_i32_0 : i32, i32
  }
  func.func @transform_6(%arg0: i32) -> (i32, i32) {
    %c0_i32 = arith.constant 0 : i32
    %c0_i32_0 = arith.constant 0 : i32
    %c0_i32_1 = arith.constant 0 : i32
    return %c0_i32, %c0_i32_0 : i32, i32
  }
  func.func @transform_7(%arg0: i32) -> (i32, i32) {
    %c0_i32 = arith.constant 0 : i32
    %c0_i32_0 = arith.constant 0 : i32
    %c0_i32_1 = arith.constant 0 : i32
    return %c0_i32, %c0_i32_0 : i32, i32
  }
  func.func @transform_8(%arg0: i32) -> (i32, i32) {
    %c0_i32 = arith.constant 0 : i32
    %c0_i32_0 = arith.constant 0 : i32
    %c0_i32_1 = arith.constant 0 : i32
    return %c0_i32, %c0_i32_0 : i32, i32
  }
  func.func @transform_9(%arg0: i32) -> (i32, i32) {
    %c0_i32 = arith.constant 0 : i32
    %c0_i32_0 = arith.constant 0 : i32
    return %c0_i32, %arg0 : i32, i32
  }
}

</mosaic_0001>

<llo_original>
// kernel: tpu_custom_call.1
$region0: #{tpu_custom_call.1}
  #allocation0 [shape = 'u32[]', space=smem, size = 0x4, offset = 0x4, fixed_abs, tag = 'smem constant byte address 0x4 - core index']
  #allocation1 [shape = 'u32[144,128]{1,0:T(1,128)}', space=vmem, size = 0x12000, scoped, tag = 'internal scratch']
  %s0 = inlined_call_operand.vmem [shape: bf16[1000,32], index: 0, kind: input, shape index: {}]
  %s1 = inlined_call_operand.vmem [shape: bf16[128,32], index: 1, kind: input, shape index: {}]
  %s2 = inlined_call_operand.vmem [shape: f32[128,1], index: 2, kind: input, shape index: {}]
  %s3 = inlined_call_operand.vmem [shape: bf16[128,128], index: 3, kind: input, shape index: {}]
  %s4 = inlined_call_operand.vmem [shape: f32[128,1], index: 4, kind: input, shape index: {}]
  %s5 = inlined_call_operand.vmem [shape: bf16[128,128], index: 5, kind: input, shape index: {}]
  %s6 = inlined_call_operand.vmem [shape: f32[128,1], index: 6, kind: input, shape index: {}]
  %s7 = inlined_call_operand.vmem [shape: bf16[8,128], index: 7, kind: input, shape index: {}]
  %s8 = inlined_call_operand.vmem [shape: f32[8,1], index: 8, kind: input, shape index: {}]
  %s9 = inlined_call_operand.hbm [shape: f32[8,1024], index: 9, kind: output, shape index: {}]
  %s10 = sld [smem:[#allocation0]]
  $region69: #{tpu_custom_call.1} parent=0
    _
  %s12 = ssub.s32 1, %s10
  %s13 = scalar_select 0, %s12, %s10
  $region1: #{tpu_custom_call.1} parent=0
    #allocation2 [shape = 'u8[32768]{0}', space=vmem, size = 0x8000, scoped, tag = 'output window, operand 0']
    #allocation3 [shape = 's32[2]{0}', space=sflag, size = 0x8, scoped, tag = 'scoped memory for tpu_custom_call.1']
    %14 = vsyncpa [#allocation3], 0
    %s15 = scalar_lea.sflag [#allocation3], 1
    %16 = vsyncpa %s15, 0
    loop: start=0, step=1, limit=4
    $region2: #{tpu_custom_call.1} parent=1 // loop_pre_header
      _
    $region3: #{tpu_custom_call.1} parent=1 // loop_header
      %s18 = sphi 0, %s22
      %p19 = scmp.ge.s32.totalorder %s18, 4
      %s28 = sphi 0, %s30
      %s31 = sphi 0, %s28
      %s32 = sphi 0, %s31
      %s48 = sphi 0, %s32
      %s52 = sphi 0, %s52
      %s54 = sphi 0, %s52
      %s55 = sphi 0, %s54
      %s69 = sphi 0, %s55
      %s73 = sphi 0, %s73
      %s75 = sphi 0, %s73
      %s76 = sphi 0, %s75
      %s90 = sphi 0, %s76
      %s94 = sphi 0, %s94
      %s96 = sphi 0, %s94
      %s97 = sphi 0, %s96
      %s111 = sphi 0, %s97
      %s115 = sphi 0, %s115
      %s117 = sphi 0, %s115
      %s118 = sphi 0, %s117
      %s132 = sphi 0, %s118
      %s136 = sphi 0, %s136
      %s138 = sphi 0, %s136
      %s139 = sphi 0, %s138
      %s153 = sphi 0, %s139
      %s157 = sphi 0, %s157
      %s159 = sphi 0, %s157
      %s160 = sphi 0, %s159
      %s174 = sphi 0, %s160
      %s178 = sphi 0, %s178
      %s180 = sphi 0, %s178
      %s181 = sphi 0, %s180
      %s195 = sphi 0, %s181
      %s199 = sphi 0, %s199
      %s201 = sphi 0, %s199
      %s202 = sphi 0, %s201
      %s216 = sphi 0, %s202
      %s222 = sphi 0, %s224
      %s225 = sphi 0, %s222
      %s226 = sphi 0, %s225
      %s242 = sphi 0, %s226
    $region4: #{tpu_custom_call.1} parent=1 // loop_header_branch
      %21 = sbr.rel (%p19) target = $region8
    $region5: #{tpu_custom_call.1} parent=1 // loop_body
      %s23 = ssub.s32 %s18, 1
      %s24 = ssub.s32 %s18, 2
      %s25 = sadd.s32 %s18, 1
      %s26 = ssub.s32 %s18, %s25
      %p27 = scmp.eq.s32.totalorder %s26, 0
      %s29 = sadd.s32 %s28, 1
      %s30 = scalar_select %p27, %s28, %s29
      %p33 = pneg %p27
      %p34 = scmp.eq.s32.totalorder %s18, 1
      %p35 = por %p33, %p34
      %p36 = scmp.ne.s32.totalorder %s28, %s31
      %p37 = scmp.eq.s32.totalorder %s18, 0
      %p38 = por %p36, %p37
      %p39 = scmp.ne.s32.totalorder %s28, %s31
      %p40 = scmp.eq.s32.totalorder %s23, 1
      %p41 = por %p39, %p40
      %p42 = scmp.ne.s32.totalorder %s31, %s32
      %p43 = scmp.eq.s32.totalorder %s23, 0
      %p44 = por %p42, %p43
      %p45 = scmp.ne.s32.totalorder %s31, %s32
      %p46 = scmp.eq.s32.totalorder %s24, 1
      %p47 = por %p45, %p46
      %p49 = scmp.ne.s32.totalorder %s32, %s48
      %p50 = scmp.eq.s32.totalorder %s24, 0
      %p51 = por %p49, %p50
      %s53 = sadd.s32 %s52, 1
      %p56 = scmp.eq.s32.totalorder %s18, 1
      %p57 = scmp.ne.s32.totalorder %s52, %s54
      %p58 = scmp.eq.s32.totalorder %s18, 0
      %p59 = por %p57, %p58
      %p60 = scmp.ne.s32.totalorder %s52, %s54
      %p61 = scmp.eq.s32.totalorder %s23, 1
      %p62 = por %p60, %p61
      %p63 = scmp.ne.s32.totalorder %s54, %s55
      %p64 = scmp.eq.s32.totalorder %s23, 0
      %p65 = por %p63, %p64
      %p66 = scmp.ne.s32.totalorder %s54, %s55
      %p67 = scmp.eq.s32.totalorder %s24, 1
      %p68 = por %p66, %p67
      %p70 = scmp.ne.s32.totalorder %s55, %s69
      %p71 = scmp.eq.s32.totalorder %s24, 0
      %p72 = por %p70, %p71
      %s74 = sadd.s32 %s73, 1
      %p77 = scmp.eq.s32.totalorder %s18, 1
      %p78 = scmp.ne.s32.totalorder %s73, %s75
      %p79 = scmp.eq.s32.totalorder %s18, 0
      %p80 = por %p78, %p79
      %p81 = scmp.ne.s32.totalorder %s73, %s75
      %p82 = scmp.eq.s32.totalorder %s23, 1
      %p83 = por %p81, %p82
      %p84 = scmp.ne.s32.totalorder %s75, %s76
      %p85 = scmp.eq.s32.totalorder %s23, 0
      %p86 = por %p84, %p85
      %p87 = scmp.ne.s32.totalorder %s75, %s76
      %p88 = scmp.eq.s32.totalorder %s24, 1
      %p89 = por %p87, %p88
      %p91 = scmp.ne.s32.totalorder %s76, %s90
      %p92 = scmp.eq.s32.totalorder %s24, 0
      %p93 = por %p91, %p92
      %s95 = sadd.s32 %s94, 1
      %p98 = scmp.eq.s32.totalorder %s18, 1
      %p99 = scmp.ne.s32.totalorder %s94, %s96
      %p100 = scmp.eq.s32.totalorder %s18, 0
      %p101 = por %p99, %p100
      %p102 = scmp.ne.s32.totalorder %s94, %s96
      %p103 = scmp.eq.s32.totalorder %s23, 1
      %p104 = por %p102, %p103
      %p105 = scmp.ne.s32.totalorder %s96, %s97
      %p106 = scmp.eq.s32.totalorder %s23, 0
      %p107 = por %p105, %p106
      %p108 = scmp.ne.s32.totalorder %s96, %s97
      %p109 = scmp.eq.s32.totalorder %s24, 1
      %p110 = por %p108, %p109
      %p112 = scmp.ne.s32.totalorder %s97, %s111
      %p113 = scmp.eq.s32.totalorder %s24, 0
      %p114 = por %p112, %p113
      %s116 = sadd.s32 %s115, 1
      %p119 = scmp.eq.s32.totalorder %s18, 1
      %p120 = scmp.ne.s32.totalorder %s115, %s117
      %p121 = scmp.eq.s32.totalorder %s18, 0
      %p122 = por %p120, %p121
      %p123 = scmp.ne.s32.totalorder %s115, %s117
      %p124 = scmp.eq.s32.totalorder %s23, 1
      %p125 = por %p123, %p124
      %p126 = scmp.ne.s32.totalorder %s117, %s118
      %p127 = scmp.eq.s32.totalorder %s23, 0
      %p128 = por %p126, %p127
      %p129 = scmp.ne.s32.totalorder %s117, %s118
      %p130 = scmp.eq.s32.totalorder %s24, 1
      %p131 = por %p129, %p130
      %p133 = scmp.ne.s32.totalorder %s118, %s132
      %p134 = scmp.eq.s32.totalorder %s24, 0
      %p135 = por %p133, %p134
      %s137 = sadd.s32 %s136, 1
      %p140 = scmp.eq.s32.totalorder %s18, 1
      %p141 = scmp.ne.s32.totalorder %s136, %s138
      %p142 = scmp.eq.s32.totalorder %s18, 0
      %p143 = por %p141, %p142
      %p144 = scmp.ne.s32.totalorder %s136, %s138
      %p145 = scmp.eq.s32.totalorder %s23, 1
      %p146 = por %p144, %p145
      %p147 = scmp.ne.s32.totalorder %s138, %s139
      %p148 = scmp.eq.s32.totalorder %s23, 0
      %p149 = por %p147, %p148
      %p150 = scmp.ne.s32.totalorder %s138, %s139
      %p151 = scmp.eq.s32.totalorder %s24, 1
      %p152 = por %p150, %p151
      %p154 = scmp.ne.s32.totalorder %s139, %s153
      %p155 = scmp.eq.s32.totalorder %s24, 0
      %p156 = por %p154, %p155
      %s158 = sadd.s32 %s157, 1
      %p161 = scmp.eq.s32.totalorder %s18, 1
      %p162 = scmp.ne.s32.totalorder %s157, %s159
      %p163 = scmp.eq.s32.totalorder %s18, 0
      %p164 = por %p162, %p163
      %p165 = scmp.ne.s32.totalorder %s157, %s159
      %p166 = scmp.eq.s32.totalorder %s23, 1
      %p167 = por %p165, %p166
      %p168 = scmp.ne.s32.totalorder %s159, %s160
      %p169 = scmp.eq.s32.totalorder %s23, 0
      %p170 = por %p168, %p169
      %p171 = scmp.ne.s32.totalorder %s159, %s160
      %p172 = scmp.eq.s32.totalorder %s24, 1
      %p173 = por %p171, %p172
      %p175 = scmp.ne.s32.totalorder %s160, %s174
      %p176 = scmp.eq.s32.totalorder %s24, 0
      %p177 = por %p175, %p176
      %s179 = sadd.s32 %s178, 1
      %p182 = scmp.eq.s32.totalorder %s18, 1
      %p183 = scmp.ne.s32.totalorder %s178, %s180
      %p184 = scmp.eq.s32.totalorder %s18, 0
      %p185 = por %p183, %p184
      %p186 = scmp.ne.s32.totalorder %s178, %s180
      %p187 = scmp.eq.s32.totalorder %s23, 1
      %p188 = por %p186, %p187
      %p189 = scmp.ne.s32.totalorder %s180, %s181
      %p190 = scmp.eq.s32.totalorder %s23, 0
      %p191 = por %p189, %p190
      %p192 = scmp.ne.s32.totalorder %s180, %s181
      %p193 = scmp.eq.s32.totalorder %s24, 1
      %p194 = por %p192, %p193
      %p196 = scmp.ne.s32.totalorder %s181, %s195
      %p197 = scmp.eq.s32.totalorder %s24, 0
      %p198 = por %p196, %p197
      %s200 = sadd.s32 %s199, 1
      %p203 = scmp.eq.s32.totalorder %s18, 1
      %p204 = scmp.ne.s32.totalorder %s199, %s201
      %p205 = scmp.eq.s32.totalorder %s18, 0
      %p206 = por %p204, %p205
      %p207 = scmp.ne.s32.totalorder %s199, %s201
      %p208 = scmp.eq.s32.totalorder %s23, 1
      %p209 = por %p207, %p208
      %p210 = scmp.ne.s32.totalorder %s201, %s202
      %p211 = scmp.eq.s32.totalorder %s23, 0
      %p212 = por %p210, %p211
      %p213 = scmp.ne.s32.totalorder %s201, %s202
      %p214 = scmp.eq.s32.totalorder %s24, 1
      %p215 = por %p213, %p214
      %p217 = scmp.ne.s32.totalorder %s202, %s216
      %p218 = scmp.eq.s32.totalorder %s24, 0
      %p219 = por %p217, %p218
      %s220 = ssub.s32 %s18, %s25
      %p221 = scmp.eq.s32.totalorder %s220, 0
      %s223 = sadd.s32 %s222, 1
      %s224 = scalar_select %p221, %s222, %s223
      %p227 = pneg %p221
      %p228 = scmp.eq.s32.totalorder %s18, 1
      %p229 = por %p227, %p228
      %p230 = scmp.ne.s32.totalorder %s222, %s225
      %p231 = scmp.eq.s32.totalorder %s18, 0
      %p232 = por %p230, %p231
      %p233 = scmp.ne.s32.totalorder %s222, %s225
      %p234 = scmp.eq.s32.totalorder %s23, 1
      %p235 = por %p233, %p234
      %p236 = scmp.ne.s32.totalorder %s225, %s226
      %p237 = scmp.eq.s32.totalorder %s23, 0
      %p238 = por %p236, %p237
      %p239 = scmp.ne.s32.totalorder %s225, %s226
      %p240 = scmp.eq.s32.totalorder %s24, 1
      %p241 = por %p239, %p240
      %p243 = scmp.ne.s32.totalorder %s226, %s242
      %p244 = scmp.eq.s32.totalorder %s24, 0
      %p245 = por %p243, %p244
      %p246 = scmp.le.s32.totalorder 1, %s18
      %p247 = scmp.lt.s32.totalorder %s18, 3
      %p248 = pnand %p246, %p247
      %p249 = pneg %p248
      // Predicated region
      $region9: #{tpu_custom_call.1} parent=5 // pred_check
        _
      $region10: #{tpu_custom_call.1} parent=5 // pred_check_branch
        %251 = sbr.rel (%p248) target = $region12
      $region11: #{tpu_custom_call.1} parent=5 // pred_region
        %s252 = ssub.s32 %s18, 1
        // Predicated region
        $region13: #{tpu_custom_call.1} parent=11 // pred_check
          %p253 = pneg %p65
        $region14: #{tpu_custom_call.1} parent=11 // pred_check_branch
          %255 = sbr.rel (%p253) target = $region16
        $region15: #{tpu_custom_call.1} parent=11 // pred_region
          _
        $region16: #{tpu_custom_call.1} parent=11 // pred_fallthru
          _
        // Predicated region
        $region17: #{tpu_custom_call.1} parent=11 // pred_check
          %p256 = pneg %p86
        $region18: #{tpu_custom_call.1} parent=11 // pred_check_branch
          %258 = sbr.rel (%p256) target = $region20
        $region19: #{tpu_custom_call.1} parent=11 // pred_region
          _
        $region20: #{tpu_custom_call.1} parent=11 // pred_fallthru
          _
        // Predicated region
        $region21: #{tpu_custom_call.1} parent=11 // pred_check
          %p259 = pneg %p107
        $region22: #{tpu_custom_call.1} parent=11 // pred_check_branch
          %261 = sbr.rel (%p259) target = $region24
        $region23: #{tpu_custom_call.1} parent=11 // pred_region
          _
        $region24: #{tpu_custom_call.1} parent=11 // pred_fallthru
          _
        // Predicated region
        $region25: #{tpu_custom_call.1} parent=11 // pred_check
          %p262 = pneg %p128
        $region26: #{tpu_custom_call.1} parent=11 // pred_check_branch
          %264 = sbr.rel (%p262) target = $region28
        $region27: #{tpu_custom_call.1} parent=11 // pred_region
          _
        $region28: #{tpu_custom_call.1} parent=11 // pred_fallthru
          _
        // Predicated region
        $region29: #{tpu_custom_call.1} parent=11 // pred_check
          %p265 = pneg %p149
        $region30: #{tpu_custom_call.1} parent=11 // pred_check_branch
          %267 = sbr.rel (%p265) target = $region32
        $region31: #{tpu_custom_call.1} parent=11 // pred_region
          _
        $region32: #{tpu_custom_call.1} parent=11 // pred_fallthru
          _
        // Predicated region
        $region33: #{tpu_custom_call.1} parent=11 // pred_check
          %p268 = pneg %p170
        $region34: #{tpu_custom_call.1} parent=11 // pred_check_branch
          %270 = sbr.rel (%p268) target = $region36
        $region35: #{tpu_custom_call.1} parent=11 // pred_region
          _
        $region36: #{tpu_custom_call.1} parent=11 // pred_fallthru
          _
        // Predicated region
        $region37: #{tpu_custom_call.1} parent=11 // pred_check
          %p271 = pneg %p191
        $region38: #{tpu_custom_call.1} parent=11 // pred_check_branch
          %273 = sbr.rel (%p271) target = $region40
        $region39: #{tpu_custom_call.1} parent=11 // pred_region
          _
        $region40: #{tpu_custom_call.1} parent=11 // pred_fallthru
          _
        // Predicated region
        $region41: #{tpu_custom_call.1} parent=11 // pred_check
          %p274 = pneg %p212
        $region42: #{tpu_custom_call.1} parent=11 // pred_check_branch
          %276 = sbr.rel (%p274) target = $region44
        $region43: #{tpu_custom_call.1} parent=11 // pred_region
          _
        $region44: #{tpu_custom_call.1} parent=11 // pred_fallthru
          _
      $region12: #{tpu_custom_call.1} parent=5 // pred_fallthru
        _
      %p277 = scmp.lt.s32.totalorder %s18, 2
      // Predicated region
      $region45: #{tpu_custom_call.1} parent=5 // pred_check
        %p278 = pneg %p277
      $region46: #{tpu_custom_call.1} parent=5 // pred_check_branch
        %280 = sbr.rel (%p278) target = $region48
      $region47: #{tpu_custom_call.1} parent=5 // pred_region
        // Predicated region
        $region49: #{tpu_custom_call.1} parent=47 // pred_check
          %p281 = pneg %p38
        $region50: #{tpu_custom_call.1} parent=47 // pred_check_branch
          %283 = sbr.rel (%p281) target = $region52
        $region51: #{tpu_custom_call.1} parent=47 // pred_region
          %s284 = smul.u32 64, %s18
          %s285 = ssub.s32 125, %s284
          %p286 = scmp.lt.s32.totalorder %s285, 64
          %s287 = scalar_select %p286, %s285, 64
          %s288 = smul.u32 64, %s287
          %p289 = scmp.lt.s32.totalorder %s284, 124
          %s290 = scalar_select %p289, %s284, 124
          %s291 = smul.addr %s290, 4
          %s292 = scalar_lea.vmem %s0, %s291
          %s293 = smul.u32 64, %s18
          %s294 = ssub.s32 125, %s293
          %p295 = scmp.lt.s32.totalorder %s294, 64
          %s296 = scalar_select %p295, %s294, 64
          %s297 = smul.u32 64, %s296
        $region52: #{tpu_custom_call.1} parent=47 // pred_fallthru
          _
      $region48: #{tpu_custom_call.1} parent=5 // pred_fallthru
        _
      %p298 = scmp.le.s32.totalorder 1, %s18
      %p299 = scmp.lt.s32.totalorder %s18, 3
      %p300 = pnand %p298, %p299
      %p301 = pneg %p300
      // Predicated region
      $region53: #{tpu_custom_call.1} parent=5 // pred_check
        _
      $region54: #{tpu_custom_call.1} parent=5 // pred_check_branch
        %303 = sbr.rel (%p300) target = $region56
      $region55: #{tpu_custom_call.1} parent=5 // pred_region
        %s304 = ssub.s32 %s18, 1
        %s305 = smul.u32 64, %s23
        %s306 = ssub.s32 125, %s305
        %p307 = scmp.lt.s32.totalorder %s306, 64
        %s308 = scalar_select %p307, %s306, 64
        %s309 = smul.u32 64, %s308
        %p310 = scmp.lt.s32.totalorder %s305, 124
        %s311 = scalar_select %p310, %s305, 124
        %s312 = smul.addr %s311, 4
        %s313 = scalar_lea.vmem %s0, %s312
        %p314 = pneg %p44
        %p315 = pneg %p41
        %p316 = pneg %p65
        %p317 = pneg %p62
        %p318 = pneg %p86
        %p319 = pneg %p83
        %p320 = pneg %p107
        %p321 = pneg %p104
        %p322 = pneg %p128
        %p323 = pneg %p125
        %p324 = pneg %p149
        %p325 = pneg %p146
        %p326 = pneg %p170
        %p327 = pneg %p167
        %p328 = pneg %p191
        %p329 = pneg %p188
        %p330 = pneg %p212
        %p331 = pneg %p209
        %p332 = pneg %p238
        %p333 = pneg %p235
        %s334 = sand.u32 %s225, 1
        %s335 = scalar_lea.sflag [#allocation3], %s334
        %s336 = sand.u32 %s225, 1
        %s337 = smul.addr %s336, 32
        %s338 = scalar_lea.vmem [#allocation2], %s337
        %s339 = smul.u32 64, %s23
        %s340 = ssub.s32 125, %s339
        %p341 = scmp.lt.s32.totalorder %s340, 64
        %s342 = scalar_select %p341, %s340, 64
        %s343 = smul.u32 64, %s342
        %p344 = scmp.lt.s32.totalorder %s339, 124
        %s345 = scalar_select %p344, %s339, 124
        %s346 = smul.addr %s345, 4
        %s347 = scalar_lea.vmem %s0, %s346
        %s348 = smul.u32 64, %s23
        %s349 = ssub.s32 125, %s348
        %p350 = scmp.lt.s32.totalorder %s349, 64
        %s351 = scalar_select %p350, %s349, 64
        %s352 = smul.u32 64, %s351
        %s353 = smul.u32 4, %s23
        %v355 = vld [vmem:[%s347] sm:$0xf]
        %v356 = vld [vmem:[%s347 + $0x4] sm:$0xf]
        %v357 = vld [vmem:[%s347 + $0x8] sm:$0xf]
        %v358 = vld [vmem:[%s347 + $0xc] sm:$0xf]
        %v359 = vld [vmem:[%s347 + $0x10] sm:$0xf]
        %v360 = vld [vmem:[%s347 + $0x14] sm:$0xf]
        %v361 = vld [vmem:[%s347 + $0x18] sm:$0xf]
        %v362 = vld [vmem:[%s347 + $0x1c] sm:$0xf]
        %v363 = vld [vmem:[%s347 + $0x20] sm:$0xf]
        %v364 = vld [vmem:[%s347 + $0x24] sm:$0xf]
        %v365 = vld [vmem:[%s347 + $0x28] sm:$0xf]
        %v366 = vld [vmem:[%s347 + $0x2c] sm:$0xf]
        %v367 = vld [vmem:[%s347 + $0x30] sm:$0xf]
        %v368 = vld [vmem:[%s347 + $0x34] sm:$0xf]
        %v369 = vld [vmem:[%s347 + $0x38] sm:$0xf]
        %v370 = vld [vmem:[%s347 + $0x3c] sm:$0xf]
        %v371 = vld [vmem:[%s347 + $0x40] sm:$0xf]
        %v372 = vld [vmem:[%s347 + $0x44] sm:$0xf]
        %v373 = vld [vmem:[%s347 + $0x48] sm:$0xf]
        %v374 = vld [vmem:[%s347 + $0x4c] sm:$0xf]
        %v375 = vld [vmem:[%s347 + $0x50] sm:$0xf]
        %v376 = vld [vmem:[%s347 + $0x54] sm:$0xf]
        %v377 = vld [vmem:[%s347 + $0x58] sm:$0xf]
        %v378 = vld [vmem:[%s347 + $0x5c] sm:$0xf]
        %v379 = vld [vmem:[%s347 + $0x60] sm:$0xf]
        %v380 = vld [vmem:[%s347 + $0x64] sm:$0xf]
        %v381 = vld [vmem:[%s347 + $0x68] sm:$0xf]
        %v382 = vld [vmem:[%s347 + $0x6c] sm:$0xf]
        %v383 = vld [vmem:[%s347 + $0x70] sm:$0xf]
        %v384 = vld [vmem:[%s347 + $0x74] sm:$0xf]
        %v385 = vld [vmem:[%s347 + $0x78] sm:$0xf]
        %v386 = vld [vmem:[%s347 + $0x7c] sm:$0xf]
        %v387 = vld [vmem:[%s347 + $0x80] sm:$0xf]
        %v388 = vld [vmem:[%s347 + $0x84] sm:$0xf]
        %v389 = vld [vmem:[%s347 + $0x88] sm:$0xf]
        %v390 = vld [vmem:[%s347 + $0x8c] sm:$0xf]
        %v391 = vld [vmem:[%s347 + $0x90] sm:$0xf]
        %v392 = vld [vmem:[%s347 + $0x94] sm:$0xf]
        %v393 = vld [vmem:[%s347 + $0x98] sm:$0xf]
        %v394 = vld [vmem:[%s347 + $0x9c] sm:$0xf]
        %v395 = vld [vmem:[%s347 + $0xa0] sm:$0xf]
        %v396 = vld [vmem:[%s347 + $0xa4] sm:$0xf]
        %v397 = vld [vmem:[%s347 + $0xa8] sm:$0xf]
        %v398 = vld [vmem:[%s347 + $0xac] sm:$0xf]
        %v399 = vld [vmem:[%s347 + $0xb0] sm:$0xf]
        %v400 = vld [vmem:[%s347 + $0xb4] sm:$0xf]
        %v401 = vld [vmem:[%s347 + $0xb8] sm:$0xf]
        %v402 = vld [vmem:[%s347 + $0xbc] sm:$0xf]
        %v403 = vld [vmem:[%s347 + $0xc0] sm:$0xf]
        %v404 = vld [vmem:[%s347 + $0xc4] sm:$0xf]
        %v405 = vld [vmem:[%s347 + $0xc8] sm:$0xf]
        %v406 = vld [vmem:[%s347 + $0xcc] sm:$0xf]
        %v407 = vld [vmem:[%s347 + $0xd0] sm:$0xf]
        %v408 = vld [vmem:[%s347 + $0xd4] sm:$0xf]
        %v409 = vld [vmem:[%s347 + $0xd8] sm:$0xf]
        %v410 = vld [vmem:[%s347 + $0xdc] sm:$0xf]
        %v411 = vld [vmem:[%s347 + $0xe0] sm:$0xf]
        %v412 = vld [vmem:[%s347 + $0xe4] sm:$0xf]
        %v413 = vld [vmem:[%s347 + $0xe8] sm:$0xf]
        %v414 = vld [vmem:[%s347 + $0xec] sm:$0xf]
        %v415 = vld [vmem:[%s347 + $0xf0] sm:$0xf]
        %v416 = vld [vmem:[%s347 + $0xf4] sm:$0xf]
        %v417 = vld [vmem:[%s347 + $0xf8] sm:$0xf]
        %v418 = vld [vmem:[%s347 + $0xfc] sm:$0xf]
        %v419 = vld [vmem:[%s1] sm:$0xf]
        %v420 = vld [vmem:[%s1 + $0x4] sm:$0xf]
        %v421 = vld [vmem:[%s1 + $0x8] sm:$0xf]
        %v422 = vld [vmem:[%s1 + $0xc] sm:$0xf]
        %v423 = vld [vmem:[%s1 + $0x10] sm:$0xf]
        %v424 = vld [vmem:[%s1 + $0x14] sm:$0xf]
        %v425 = vld [vmem:[%s1 + $0x18] sm:$0xf]
        %v426 = vld [vmem:[%s1 + $0x1c] sm:$0xf]
        %v427 = vld [vmem:[%s1 + $0x20] sm:$0xf]
        %v428 = vld [vmem:[%s1 + $0x24] sm:$0xf]
        %v429 = vld [vmem:[%s1 + $0x28] sm:$0xf]
        %v430 = vld [vmem:[%s1 + $0x2c] sm:$0xf]
        %v431 = vld [vmem:[%s1 + $0x30] sm:$0xf]
        %v432 = vld [vmem:[%s1 + $0x34] sm:$0xf]
        %v433 = vld [vmem:[%s1 + $0x38] sm:$0xf]
        %v434 = vld [vmem:[%s1 + $0x3c] sm:$0xf]
        %v435 = vld [vmem:[%s2] sm:$0xff]
        %v436 = vld [vmem:[%s2 + $0x8] sm:$0xff]
        %v437 = vld [vmem:[%s2 + $0x10] sm:$0xff]
        %v438 = vld [vmem:[%s2 + $0x18] sm:$0xff]
        %v439 = vld [vmem:[%s2 + $0x20] sm:$0xff]
        %v440 = vld [vmem:[%s2 + $0x28] sm:$0xff]
        %v441 = vld [vmem:[%s2 + $0x30] sm:$0xff]
        %v442 = vld [vmem:[%s2 + $0x38] sm:$0xff]
        %v443 = vld [vmem:[%s2 + $0x40] sm:$0xff]
        %v444 = vld [vmem:[%s2 + $0x48] sm:$0xff]
        %v445 = vld [vmem:[%s2 + $0x50] sm:$0xff]
        %v446 = vld [vmem:[%s2 + $0x58] sm:$0xff]
        %v447 = vld [vmem:[%s2 + $0x60] sm:$0xff]
        %v448 = vld [vmem:[%s2 + $0x68] sm:$0xff]
        %v449 = vld [vmem:[%s2 + $0x70] sm:$0xff]
        %v450 = vld [vmem:[%s2 + $0x78] sm:$0xff]
        %452 = vset.pattern.permute.xlu0 0
        %453 = vperm.xlu0 %452, %v435
        %v454 = vpop.permute.xlu0 %453
        %457 = vset.pattern.permute.xlu0 0
        %458 = vperm.xlu0 %457, %v436
        %v459 = vpop.permute.xlu0 %458
        %462 = vset.pattern.permute.xlu0 0
        %463 = vperm.xlu0 %462, %v437
        %v464 = vpop.permute.xlu0 %463
        %467 = vset.pattern.permute.xlu0 0
        %468 = vperm.xlu0 %467, %v438
        %v469 = vpop.permute.xlu0 %468
        %472 = vset.pattern.permute.xlu0 0
        %473 = vperm.xlu0 %472, %v439
        %v474 = vpop.permute.xlu0 %473
        %477 = vset.pattern.permute.xlu0 0
        %478 = vperm.xlu0 %477, %v440
        %v479 = vpop.permute.xlu0 %478
        %482 = vset.pattern.permute.xlu0 0
        %483 = vperm.xlu0 %482, %v441
        %v484 = vpop.permute.xlu0 %483
        %487 = vset.pattern.permute.xlu0 0
        %488 = vperm.xlu0 %487, %v442
        %v489 = vpop.permute.xlu0 %488
        %492 = vset.pattern.permute.xlu0 0
        %493 = vperm.xlu0 %492, %v443
        %v494 = vpop.permute.xlu0 %493
        %497 = vset.pattern.permute.xlu0 0
        %498 = vperm.xlu0 %497, %v444
        %v499 = vpop.permute.xlu0 %498
        %502 = vset.pattern.permute.xlu0 0
        %503 = vperm.xlu0 %502, %v445
        %v504 = vpop.permute.xlu0 %503
        %507 = vset.pattern.permute.xlu0 0
        %508 = vperm.xlu0 %507, %v446
        %v509 = vpop.permute.xlu0 %508
        %512 = vset.pattern.permute.xlu0 0
        %513 = vperm.xlu0 %512, %v447
        %v514 = vpop.permute.xlu0 %513
        %517 = vset.pattern.permute.xlu0 0
        %518 = vperm.xlu0 %517, %v448
        %v519 = vpop.permute.xlu0 %518
        %522 = vset.pattern.permute.xlu0 0
        %523 = vperm.xlu0 %522, %v449
        %v524 = vpop.permute.xlu0 %523
        %527 = vset.pattern.permute.xlu0 0
        %528 = vperm.xlu0 %527, %v450
        %v529 = vpop.permute.xlu0 %528
        %v547 = vunpack.c.l.b16 %v419
        %v548 = vunpack.c.l.b16 %v420
        %v549 = vunpack.c.l.b16 %v421
        %v550 = vunpack.c.l.b16 %v422
        %v551 = vunpack.c.l.b16 %v423
        %v552 = vunpack.c.l.b16 %v424
        %v553 = vunpack.c.l.b16 %v425
        %v554 = vunpack.c.l.b16 %v426
        %v555 = vunpack.c.l.b16 %v427
        %v556 = vunpack.c.l.b16 %v428
        %v557 = vunpack.c.l.b16 %v429
        %v558 = vunpack.c.l.b16 %v430
        %v559 = vunpack.c.l.b16 %v431
        %v560 = vunpack.c.l.b16 %v432
        %v561 = vunpack.c.l.b16 %v433
        %v562 = vunpack.c.l.b16 %v434
        %v563 = vpack.c.b16 %v548, %v547
        %v564 = vpack.c.b16 %v550, %v549
        %v565 = vpack.c.b16 %v552, %v551
        %v566 = vpack.c.b16 %v554, %v553
        %v567 = vpack.c.b16 %v556, %v555
        %v568 = vpack.c.b16 %v558, %v557
        %v569 = vpack.c.b16 %v560, %v559
        %v570 = vpack.c.b16 %v562, %v561
        %v635 = vunpack.c.l.b16 %v355
        %v636 = vunpack.c.l.b16 %v356
        %v637 = vunpack.c.l.b16 %v357
        %v638 = vunpack.c.l.b16 %v358
        %v639 = vunpack.c.l.b16 %v359
        %v640 = vunpack.c.l.b16 %v360
        %v641 = vunpack.c.l.b16 %v361
        %v642 = vunpack.c.l.b16 %v362
        %v643 = vunpack.c.l.b16 %v363
        %v644 = vunpack.c.l.b16 %v364
        %v645 = vunpack.c.l.b16 %v365
        %v646 = vunpack.c.l.b16 %v366
        %v647 = vunpack.c.l.b16 %v367
        %v648 = vunpack.c.l.b16 %v368
        %v649 = vunpack.c.l.b16 %v369
        %v650 = vunpack.c.l.b16 %v370
        %v651 = vunpack.c.l.b16 %v371
        %v652 = vunpack.c.l.b16 %v372
        %v653 = vunpack.c.l.b16 %v373
        %v654 = vunpack.c.l.b16 %v374
        %v655 = vunpack.c.l.b16 %v375
        %v656 = vunpack.c.l.b16 %v376
        %v657 = vunpack.c.l.b16 %v377
        %v658 = vunpack.c.l.b16 %v378
        %v659 = vunpack.c.l.b16 %v379
        %v660 = vunpack.c.l.b16 %v380
        %v661 = vunpack.c.l.b16 %v381
        %v662 = vunpack.c.l.b16 %v382
        %v663 = vunpack.c.l.b16 %v383
        %v664 = vunpack.c.l.b16 %v384
        %v665 = vunpack.c.l.b16 %v385
        %v666 = vunpack.c.l.b16 %v386
        %v667 = vunpack.c.l.b16 %v387
        %v668 = vunpack.c.l.b16 %v388
        %v669 = vunpack.c.l.b16 %v389
        %v670 = vunpack.c.l.b16 %v390
        %v671 = vunpack.c.l.b16 %v391
        %v672 = vunpack.c.l.b16 %v392
        %v673 = vunpack.c.l.b16 %v393
        %v674 = vunpack.c.l.b16 %v394
        %v675 = vunpack.c.l.b16 %v395
        %v676 = vunpack.c.l.b16 %v396
        %v677 = vunpack.c.l.b16 %v397
        %v678 = vunpack.c.l.b16 %v398
        %v679 = vunpack.c.l.b16 %v399
        %v680 = vunpack.c.l.b16 %v400
        %v681 = vunpack.c.l.b16 %v401
        %v682 = vunpack.c.l.b16 %v402
        %v683 = vunpack.c.l.b16 %v403
        %v684 = vunpack.c.l.b16 %v404
        %v685 = vunpack.c.l.b16 %v405
        %v686 = vunpack.c.l.b16 %v406
        %v687 = vunpack.c.l.b16 %v407
        %v688 = vunpack.c.l.b16 %v408
        %v689 = vunpack.c.l.b16 %v409
        %v690 = vunpack.c.l.b16 %v410
        %v691 = vunpack.c.l.b16 %v411
        %v692 = vunpack.c.l.b16 %v412
        %v693 = vunpack.c.l.b16 %v413
        %v694 = vunpack.c.l.b16 %v414
        %v695 = vunpack.c.l.b16 %v415
        %v696 = vunpack.c.l.b16 %v416
        %v697 = vunpack.c.l.b16 %v417
        %v698 = vunpack.c.l.b16 %v418
        %v699 = vpack.c.b16 %v636, %v635
        %v700 = vpack.c.b16 %v638, %v637
        %v701 = vpack.c.b16 %v640, %v639
        %v702 = vpack.c.b16 %v642, %v641
        %v703 = vpack.c.b16 %v644, %v643
        %v704 = vpack.c.b16 %v646, %v645
        %v705 = vpack.c.b16 %v648, %v647
        %v706 = vpack.c.b16 %v650, %v649
        %v707 = vpack.c.b16 %v652, %v651
        %v708 = vpack.c.b16 %v654, %v653
        %v709 = vpack.c.b16 %v656, %v655
        %v710 = vpack.c.b16 %v658, %v657
        %v711 = vpack.c.b16 %v660, %v659
        %v712 = vpack.c.b16 %v662, %v661
        %v713 = vpack.c.b16 %v664, %v663
        %v714 = vpack.c.b16 %v666, %v665
        %v715 = vpack.c.b16 %v668, %v667
        %v716 = vpack.c.b16 %v670, %v669
        %v717 = vpack.c.b16 %v672, %v671
        %v718 = vpack.c.b16 %v674, %v673
        %v719 = vpack.c.b16 %v676, %v675
        %v720 = vpack.c.b16 %v678, %v677
        %v721 = vpack.c.b16 %v680, %v679
        %v722 = vpack.c.b16 %v682, %v681
        %v723 = vpack.c.b16 %v684, %v683
        %v724 = vpack.c.b16 %v686, %v685
        %v725 = vpack.c.b16 %v688, %v687
        %v726 = vpack.c.b16 %v690, %v689
        %v727 = vpack.c.b16 %v692, %v691
        %v728 = vpack.c.b16 %v694, %v693
        %v729 = vpack.c.b16 %v696, %v695
        %v730 = vpack.c.b16 %v698, %v697
        %vm731 = vcmask 261120
        %v733 = vsel %vm731, %v563, 0
        %v736 = vsel %vm731, %v564, 0
        %v739 = vsel %vm731, %v565, 0
        %v742 = vsel %vm731, %v566, 0
        %v745 = vsel %vm731, %v567, 0
        %v748 = vsel %vm731, %v568, 0
        %v751 = vsel %vm731, %v569, 0
        %v754 = vsel %vm731, %v570, 0
        %v757 = vsel %vm731, %v699, 0
        %v760 = vsel %vm731, %v700, 0
        %v763 = vsel %vm731, %v701, 0
        %v766 = vsel %vm731, %v702, 0
        %v769 = vsel %vm731, %v703, 0
        %v772 = vsel %vm731, %v704, 0
        %v775 = vsel %vm731, %v705, 0
        %v778 = vsel %vm731, %v706, 0
        %v781 = vsel %vm731, %v707, 0
        %v784 = vsel %vm731, %v708, 0
        %v787 = vsel %vm731, %v709, 0
        %v790 = vsel %vm731, %v710, 0
        %v793 = vsel %vm731, %v711, 0
        %v796 = vsel %vm731, %v712, 0
        %v799 = vsel %vm731, %v713, 0
        %v802 = vsel %vm731, %v714, 0
        %v805 = vsel %vm731, %v715, 0
        %v808 = vsel %vm731, %v716, 0
        %v811 = vsel %vm731, %v717, 0
        %v814 = vsel %vm731, %v718, 0
        %v817 = vsel %vm731, %v719, 0
        %v820 = vsel %vm731, %v720, 0
        %v823 = vsel %vm731, %v721, 0
        %v826 = vsel %vm731, %v722, 0
        %v829 = vsel %vm731, %v723, 0
        %v832 = vsel %vm731, %v724, 0
        %v835 = vsel %vm731, %v725, 0
        %v838 = vsel %vm731, %v726, 0
        %v841 = vsel %vm731, %v727, 0
        %v844 = vsel %vm731, %v728, 0
        %v847 = vsel %vm731, %v729, 0
        %v850 = vsel %vm731, %v730, 0
        %852 = vmatprep.subr.bf16.mxu0 0
        %853 = vmatpush1.bf16.xpose.msra.mxu0 %v757
        %854 = vmatprep.subr.bf16.mxu0 0
        %855 = vmatpush1.bf16.xpose.msra.mxu0 %v760
        %856 = vmatprep.subr.bf16.mxu0 0
        %857 = vmatpush1.bf16.xpose.msra.mxu0 %v763
        %858 = vmatprep.subr.bf16.mxu0 0
        %859 = vmatpush1.bf16.xpose.msra.mxu0 %v766
        %860 = vmatprep.subr.bf16.mxu0 0
        %861 = vmatpush1.bf16.xpose.msra.mxu0 %v769
        %862 = vmatprep.subr.bf16.mxu0 0
        %863 = vmatpush1.bf16.xpose.msra.mxu0 %v772
        %864 = vmatprep.subr.bf16.mxu0 0
        %865 = vmatpush1.bf16.xpose.msra.mxu0 %v775
        %866 = vmatprep.subr.bf16.mxu0 0
        %867 = vmatpush1.bf16.xpose.msra.mxu0 %v778
        %868 = vmatprep.subr.bf16.mxu0 0
        %869 = vmatpush1.bf16.xpose.msra.mxu0 %v781
        %870 = vmatprep.subr.bf16.mxu0 0
        %871 = vmatpush1.bf16.xpose.msra.mxu0 %v784
        %872 = vmatprep.subr.bf16.mxu0 0
        %873 = vmatpush1.bf16.xpose.msra.mxu0 %v787
        %874 = vmatprep.subr.bf16.mxu0 0
        %875 = vmatpush1.bf16.xpose.msra.mxu0 %v790
        %876 = vmatprep.subr.bf16.mxu0 0
        %877 = vmatpush1.bf16.xpose.msra.mxu0 %v793
        %878 = vmatprep.subr.bf16.mxu0 0
        %879 = vmatpush1.bf16.xpose.msra.mxu0 %v796
        %880 = vmatprep.subr.bf16.mxu0 0
        %881 = vmatpush1.bf16.xpose.msra.mxu0 %v799
        %882 = vmatprep.subr.bf16.mxu0 0
        %883 = vmatpush1.bf16.xpose.msra.mxu0 %v802
        %884 = vmatprep.mubr.bf16.mxu0 0
        %885 = vmatmul.mubr.bf16.gmra.mrb[0].mxu0 %v733
        %v886 = vpop.f32.mrb[0].mxu0
        %v887 = vadd.f32 %v454, %v886
        %v888 = vpop.f32.mrb[0].mxu0
        %v889 = vadd.f32 %v454, %v888
        %v890 = vpop.f32.mrb[0].mxu0
        %v891 = vadd.f32 %v459, %v890
        %v892 = vpop.f32.mrb[0].mxu0
        %v893 = vadd.f32 %v459, %v892
        %894 = vmatprep.mubr.bf16.mxu0 0
        %895 = vmatmul.mubr.bf16.gmra.mrb[0].mxu0 %v736
        %v896 = vpop.f32.mrb[0].mxu0
        %v897 = vadd.f32 %v464, %v896
        %v898 = vpop.f32.mrb[0].mxu0
        %v899 = vadd.f32 %v464, %v898
        %v900 = vpop.f32.mrb[0].mxu0
        %v901 = vadd.f32 %v469, %v900
        %v902 = vpop.f32.mrb[0].mxu0
        %v903 = vadd.f32 %v469, %v902
        %904 = vmatprep.mubr.bf16.mxu0 0
        %905 = vmatmul.mubr.bf16.gmra.mrb[0].mxu0 %v739
        %v906 = vpop.f32.mrb[0].mxu0
        %v907 = vadd.f32 %v474, %v906
        %v908 = vpop.f32.mrb[0].mxu0
        %v909 = vadd.f32 %v474, %v908
        %v910 = vpop.f32.mrb[0].mxu0
        %v911 = vadd.f32 %v479, %v910
        %v912 = vpop.f32.mrb[0].mxu0
        %v913 = vadd.f32 %v479, %v912
        %914 = vmatprep.mubr.bf16.mxu0 0
        %915 = vmatmul.mubr.bf16.gmra.mrb[0].mxu0 %v742
        %v916 = vpop.f32.mrb[0].mxu0
        %v917 = vadd.f32 %v484, %v916
        %v918 = vpop.f32.mrb[0].mxu0
        %v919 = vadd.f32 %v484, %v918
        %v920 = vpop.f32.mrb[0].mxu0
        %v921 = vadd.f32 %v489, %v920
        %v922 = vpop.f32.mrb[0].mxu0
        %v923 = vadd.f32 %v489, %v922
        %924 = vmatprep.mubr.bf16.mxu0 0
        %925 = vmatmul.mubr.bf16.gmra.mrb[0].mxu0 %v745
        %v926 = vpop.f32.mrb[0].mxu0
        %v927 = vadd.f32 %v494, %v926
        %v928 = vpop.f32.mrb[0].mxu0
        %v929 = vadd.f32 %v494, %v928
        %v930 = vpop.f32.mrb[0].mxu0
        %v931 = vadd.f32 %v499, %v930
        %v932 = vpop.f32.mrb[0].mxu0
        %v933 = vadd.f32 %v499, %v932
        %934 = vmatprep.mubr.bf16.mxu0 0
        %935 = vmatmul.mubr.bf16.gmra.mrb[0].mxu0 %v748
        %v936 = vpop.f32.mrb[0].mxu0
        %v937 = vadd.f32 %v504, %v936
        %v938 = vpop.f32.mrb[0].mxu0
        %v939 = vadd.f32 %v504, %v938
        %v940 = vpop.f32.mrb[0].mxu0
        %v941 = vadd.f32 %v509, %v940
        %v942 = vpop.f32.mrb[0].mxu0
        %v943 = vadd.f32 %v509, %v942
        %944 = vmatprep.mubr.bf16.mxu0 0
        %945 = vmatmul.mubr.bf16.gmra.mrb[0].mxu0 %v751
        %v946 = vpop.f32.mrb[0].mxu0
        %v947 = vadd.f32 %v514, %v946
        %v948 = vpop.f32.mrb[0].mxu0
        %v949 = vadd.f32 %v514, %v948
        %v950 = vpop.f32.mrb[0].mxu0
        %v951 = vadd.f32 %v519, %v950
        %v952 = vpop.f32.mrb[0].mxu0
        %v953 = vadd.f32 %v519, %v952
        %954 = vmatprep.mubr.bf16.mxu0 0
        %955 = vmatmul.mubr.bf16.gmra.mrb[0].mxu0 %v754
        %v956 = vpop.f32.mrb[0].mxu0
        %v957 = vadd.f32 %v524, %v956
        %v958 = vpop.f32.mrb[0].mxu0
        %v959 = vadd.f32 %v524, %v958
        %v960 = vpop.f32.mrb[0].mxu0
        %v961 = vadd.f32 %v529, %v960
        %v962 = vpop.f32.mrb[0].mxu0
        %v963 = vadd.f32 %v529, %v962
        %964 = vdwg.mxu0
        %965 = vmatprep.subr.bf16.mxu0 0
        %966 = vmatpush1.bf16.xpose.msra.mxu0 %v805
        %967 = vmatprep.subr.bf16.mxu0 0
        %968 = vmatpush1.bf16.xpose.msra.mxu0 %v808
        %969 = vmatprep.subr.bf16.mxu0 0
        %970 = vmatpush1.bf16.xpose.msra.mxu0 %v811
        %971 = vmatprep.subr.bf16.mxu0 0
        %972 = vmatpush1.bf16.xpose.msra.mxu0 %v814
        %973 = vmatprep.subr.bf16.mxu0 0
        %974 = vmatpush1.bf16.xpose.msra.mxu0 %v817
        %975 = vmatprep.subr.bf16.mxu0 0
        %976 = vmatpush1.bf16.xpose.msra.mxu0 %v820
        %977 = vmatprep.subr.bf16.mxu0 0
        %978 = vmatpush1.bf16.xpose.msra.mxu0 %v823
        %979 = vmatprep.subr.bf16.mxu0 0
        %980 = vmatpush1.bf16.xpose.msra.mxu0 %v826
        %981 = vmatprep.subr.bf16.mxu0 0
        %982 = vmatpush1.bf16.xpose.msra.mxu0 %v829
        %983 = vmatprep.subr.bf16.mxu0 0
        %984 = vmatpush1.bf16.xpose.msra.mxu0 %v832
        %985 = vmatprep.subr.bf16.mxu0 0
        %986 = vmatpush1.bf16.xpose.msra.mxu0 %v835
        %987 = vmatprep.subr.bf16.mxu0 0
        %988 = vmatpush1.bf16.xpose.msra.mxu0 %v838
        %989 = vmatprep.subr.bf16.mxu0 0
        %990 = vmatpush1.bf16.xpose.msra.mxu0 %v841
        %991 = vmatprep.subr.bf16.mxu0 0
        %992 = vmatpush1.bf16.xpose.msra.mxu0 %v844
        %993 = vmatprep.subr.bf16.mxu0 0
        %994 = vmatpush1.bf16.xpose.msra.mxu0 %v847
        %995 = vmatprep.subr.bf16.mxu0 0
        %996 = vmatpush1.bf16.xpose.msra.mxu0 %v850
        %997 = vmatprep.mubr.bf16.mxu0 0
        %998 = vmatmul.mubr.bf16.gmra.mrb[0].mxu0 %v733
        %v999 = vpop.f32.mrb[0].mxu0
        %v1000 = vadd.f32 %v454, %v999
        %v1001 = vpop.f32.mrb[0].mxu0
        %v1002 = vadd.f32 %v454, %v1001
        %v1003 = vpop.f32.mrb[0].mxu0
        %v1004 = vadd.f32 %v459, %v1003
        %v1005 = vpop.f32.mrb[0].mxu0
        %v1006 = vadd.f32 %v459, %v1005
        %1007 = vmatprep.mubr.bf16.mxu0 0
        %1008 = vmatmul.mubr.bf16.gmra.mrb[0].mxu0 %v736
        %v1009 = vpop.f32.mrb[0].mxu0
        %v1010 = vadd.f32 %v464, %v1009
        %v1011 = vpop.f32.mrb[0].mxu0
        %v1012 = vadd.f32 %v464, %v1011
        %v1013 = vpop.f32.mrb[0].mxu0
        %v1014 = vadd.f32 %v469, %v1013
        %v1015 = vpop.f32.mrb[0].mxu0
        %v1016 = vadd.f32 %v469, %v1015
        %1017 = vmatprep.mubr.bf16.mxu0 0
        %1018 = vmatmul.mubr.bf16.gmra.mrb[0].mxu0 %v739
        %v1019 = vpop.f32.mrb[0].mxu0
        %v1020 = vadd.f32 %v474, %v1019
        %v1021 = vpop.f32.mrb[0].mxu0
        %v1022 = vadd.f32 %v474, %v1021
        %v1023 = vpop.f32.mrb[0].mxu0
        %v1024 = vadd.f32 %v479, %v1023
        %v1025 = vpop.f32.mrb[0].mxu0
        %v1026 = vadd.f32 %v479, %v1025
        %1027 = vmatprep.mubr.bf16.mxu0 0
        %1028 = vmatmul.mubr.bf16.gmra.mrb[0].mxu0 %v742
        %v1029 = vpop.f32.mrb[0].mxu0
        %v1030 = vadd.f32 %v484, %v1029
        %v1031 = vpop.f32.mrb[0].mxu0
        %v1032 = vadd.f32 %v484, %v1031
        %v1033 = vpop.f32.mrb[0].mxu0
        %v1034 = vadd.f32 %v489, %v1033
        %v1035 = vpop.f32.mrb[0].mxu0
        %v1036 = vadd.f32 %v489, %v1035
        %1037 = vmatprep.mubr.bf16.mxu0 0
        %1038 = vmatmul.mubr.bf16.gmra.mrb[0].mxu0 %v745
        %v1039 = vpop.f32.mrb[0].mxu0
        %v1040 = vadd.f32 %v494, %v1039
        %v1041 = vpop.f32.mrb[0].mxu0
        %v1042 = vadd.f32 %v494, %v1041
        %v1043 = vpop.f32.mrb[0].mxu0
        %v1044 = vadd.f32 %v499, %v1043
        %v1045 = vpop.f32.mrb[0].mxu0
        %v1046 = vadd.f32 %v499, %v1045
        %1047 = vmatprep.mubr.bf16.mxu0 0
        %1048 = vmatmul.mubr.bf16.gmra.mrb[0].mxu0 %v748
        %v1049 = vpop.f32.mrb[0].mxu0
        %v1050 = vadd.f32 %v504, %v1049
        %v1051 = vpop.f32.mrb[0].mxu0
        %v1052 = vadd.f32 %v504, %v1051
        %v1053 = vpop.f32.mrb[0].mxu0
        %v1054 = vadd.f32 %v509, %v1053
        %v1055 = vpop.f32.mrb[0].mxu0
        %v1056 = vadd.f32 %v509, %v1055
        %1057 = vmatprep.mubr.bf16.mxu0 0
        %1058 = vmatmul.mubr.bf16.gmra.mrb[0].mxu0 %v751
        %v1059 = vpop.f32.mrb[0].mxu0
        %v1060 = vadd.f32 %v514, %v1059
        %v1061 = vpop.f32.mrb[0].mxu0
        %v1062 = vadd.f32 %v514, %v1061
        %v1063 = vpop.f32.mrb[0].mxu0
        %v1064 = vadd.f32 %v519, %v1063
        %v1065 = vpop.f32.mrb[0].mxu0
        %v1066 = vadd.f32 %v519, %v1065
        %1067 = vmatprep.mubr.bf16.mxu0 0
        %1068 = vmatmul.mubr.bf16.gmra.mrb[0].mxu0 %v754
        %v1069 = vpop.f32.mrb[0].mxu0
        %v1070 = vadd.f32 %v524, %v1069
        %v1071 = vpop.f32.mrb[0].mxu0
        %v1072 = vadd.f32 %v524, %v1071
        %v1073 = vpop.f32.mrb[0].mxu0
        %v1074 = vadd.f32 %v529, %v1073
        %v1075 = vpop.f32.mrb[0].mxu0
        %v1076 = vadd.f32 %v529, %v1075
        %1077 = vdwg.mxu0
        %v1078 = vmax.f32 %v887, 0.0
        %v1079 = vmax.f32 %v889, 0.0
        %v1080 = vmax.f32 %v1000, 0.0
        %v1081 = vmax.f32 %v1002, 0.0
        %v1082 = vmax.f32 %v891, 0.0
        %v1083 = vmax.f32 %v893, 0.0
        %v1084 = vmax.f32 %v1004, 0.0
        %v1085 = vmax.f32 %v1006, 0.0
        %v1086 = vmax.f32 %v897, 0.0
        %v1087 = vmax.f32 %v899, 0.0
        %v1088 = vmax.f32 %v1010, 0.0
        %v1089 = vmax.f32 %v1012, 0.0
        %v1090 = vmax.f32 %v901, 0.0
        %v1091 = vmax.f32 %v903, 0.0
        %v1092 = vmax.f32 %v1014, 0.0
        %v1093 = vmax.f32 %v1016, 0.0
        %v1094 = vmax.f32 %v907, 0.0
        %v1095 = vmax.f32 %v909, 0.0
        %v1096 = vmax.f32 %v1020, 0.0
        %v1097 = vmax.f32 %v1022, 0.0
        %v1098 = vmax.f32 %v911, 0.0
        %v1099 = vmax.f32 %v913, 0.0
        %v1100 = vmax.f32 %v1024, 0.0
        %v1101 = vmax.f32 %v1026, 0.0
        %v1102 = vmax.f32 %v917, 0.0
        %v1103 = vmax.f32 %v919, 0.0
        %v1104 = vmax.f32 %v1030, 0.0
        %v1105 = vmax.f32 %v1032, 0.0
        %v1106 = vmax.f32 %v921, 0.0
        %v1107 = vmax.f32 %v923, 0.0
        %v1108 = vmax.f32 %v1034, 0.0
        %v1109 = vmax.f32 %v1036, 0.0
        %v1110 = vmax.f32 %v927, 0.0
        %v1111 = vmax.f32 %v929, 0.0
        %v1112 = vmax.f32 %v1040, 0.0
        %v1113 = vmax.f32 %v1042, 0.0
        %v1114 = vmax.f32 %v931, 0.0
        %v1115 = vmax.f32 %v933, 0.0
        %v1116 = vmax.f32 %v1044, 0.0
        %v1117 = vmax.f32 %v1046, 0.0
        %v1118 = vmax.f32 %v937, 0.0
        %v1119 = vmax.f32 %v939, 0.0
        %v1120 = vmax.f32 %v1050, 0.0
        %v1121 = vmax.f32 %v1052, 0.0
        %v1122 = vmax.f32 %v941, 0.0
        %v1123 = vmax.f32 %v943, 0.0
        %v1124 = vmax.f32 %v1054, 0.0
        %v1125 = vmax.f32 %v1056, 0.0
        %v1126 = vmax.f32 %v947, 0.0
        %v1127 = vmax.f32 %v949, 0.0
        %v1128 = vmax.f32 %v1060, 0.0
        %v1129 = vmax.f32 %v1062, 0.0
        %v1130 = vmax.f32 %v951, 0.0
        %v1131 = vmax.f32 %v953, 0.0
        %v1132 = vmax.f32 %v1064, 0.0
        %v1133 = vmax.f32 %v1066, 0.0
        %v1134 = vmax.f32 %v957, 0.0
        %v1135 = vmax.f32 %v959, 0.0
        %v1136 = vmax.f32 %v1070, 0.0
        %v1137 = vmax.f32 %v1072, 0.0
        %v1138 = vmax.f32 %v961, 0.0
        %v1139 = vmax.f32 %v963, 0.0
        %v1140 = vmax.f32 %v1074, 0.0
        %v1141 = vmax.f32 %v1076, 0.0
        %v1142 = vpack.c.bf16 %v1082, %v1078
        %v1143 = vpack.c.bf16 %v1083, %v1079
        %v1144 = vpack.c.bf16 %v1084, %v1080
        %v1145 = vpack.c.bf16 %v1085, %v1081
        %v1146 = vpack.c.bf16 %v1090, %v1086
        %v1147 = vpack.c.bf16 %v1091, %v1087
        %v1148 = vpack.c.bf16 %v1092, %v1088
        %v1149 = vpack.c.bf16 %v1093, %v1089
        %v1150 = vpack.c.bf16 %v1098, %v1094
        %v1151 = vpack.c.bf16 %v1099, %v1095
        %v1152 = vpack.c.bf16 %v1100, %v1096
        %v1153 = vpack.c.bf16 %v1101, %v1097
        %v1154 = vpack.c.bf16 %v1106, %v1102
        %v1155 = vpack.c.bf16 %v1107, %v1103
        %v1156 = vpack.c.bf16 %v1108, %v1104
        %v1157 = vpack.c.bf16 %v1109, %v1105
        %v1158 = vpack.c.bf16 %v1114, %v1110
        %v1159 = vpack.c.bf16 %v1115, %v1111
        %v1160 = vpack.c.bf16 %v1116, %v1112
        %v1161 = vpack.c.bf16 %v1117, %v1113
        %v1162 = vpack.c.bf16 %v1122, %v1118
        %v1163 = vpack.c.bf16 %v1123, %v1119
        %v1164 = vpack.c.bf16 %v1124, %v1120
        %v1165 = vpack.c.bf16 %v1125, %v1121
        %v1166 = vpack.c.bf16 %v1130, %v1126
        %v1167 = vpack.c.bf16 %v1131, %v1127
        %v1168 = vpack.c.bf16 %v1132, %v1128
        %v1169 = vpack.c.bf16 %v1133, %v1129
        %v1170 = vpack.c.bf16 %v1138, %v1134
        %v1171 = vpack.c.bf16 %v1139, %v1135
        %v1172 = vpack.c.bf16 %v1140, %v1136
        %v1173 = vpack.c.bf16 %v1141, %v1137
        %v1174 = vld [vmem:[%s3] sm:$0xf]
        %v1175 = vld [vmem:[%s3 + $0x4] sm:$0xf]
        %v1176 = vld [vmem:[%s3 + $0x8] sm:$0xf]
        %v1177 = vld [vmem:[%s3 + $0xc] sm:$0xf]
        %v1178 = vld [vmem:[%s3 + $0x10] sm:$0xf]
        %v1179 = vld [vmem:[%s3 + $0x14] sm:$0xf]
        %v1180 = vld [vmem:[%s3 + $0x18] sm:$0xf]
        %v1181 = vld [vmem:[%s3 + $0x1c] sm:$0xf]
        %v1182 = vld [vmem:[%s3 + $0x20] sm:$0xf]
        %v1183 = vld [vmem:[%s3 + $0x24] sm:$0xf]
        %v1184 = vld [vmem:[%s3 + $0x28] sm:$0xf]
        %v1185 = vld [vmem:[%s3 + $0x2c] sm:$0xf]
        %v1186 = vld [vmem:[%s3 + $0x30] sm:$0xf]
        %v1187 = vld [vmem:[%s3 + $0x34] sm:$0xf]
        %v1188 = vld [vmem:[%s3 + $0x38] sm:$0xf]
        %v1189 = vld [vmem:[%s3 + $0x3c] sm:$0xf]
        %v1190 = vld [vmem:[%s4] sm:$0xff]
        %v1191 = vld [vmem:[%s4 + $0x8] sm:$0xff]
        %v1192 = vld [vmem:[%s4 + $0x10] sm:$0xff]
        %v1193 = vld [vmem:[%s4 + $0x18] sm:$0xff]
        %v1194 = vld [vmem:[%s4 + $0x20] sm:$0xff]
        %v1195 = vld [vmem:[%s4 + $0x28] sm:$0xff]
        %v1196 = vld [vmem:[%s4 + $0x30] sm:$0xff]
        %v1197 = vld [vmem:[%s4 + $0x38] sm:$0xff]
        %v1198 = vld [vmem:[%s4 + $0x40] sm:$0xff]
        %v1199 = vld [vmem:[%s4 + $0x48] sm:$0xff]
        %v1200 = vld [vmem:[%s4 + $0x50] sm:$0xff]
        %v1201 = vld [vmem:[%s4 + $0x58] sm:$0xff]
        %v1202 = vld [vmem:[%s4 + $0x60] sm:$0xff]
        %v1203 = vld [vmem:[%s4 + $0x68] sm:$0xff]
        %v1204 = vld [vmem:[%s4 + $0x70] sm:$0xff]
        %v1205 = vld [vmem:[%s4 + $0x78] sm:$0xff]
        %1207 = vset.pattern.permute.xlu0 0
        %1208 = vperm.xlu0 %1207, %v1190
        %v1209 = vpop.permute.xlu0 %1208
        %1212 = vset.pattern.permute.xlu0 0
        %1213 = vperm.xlu0 %1212, %v1191
        %v1214 = vpop.permute.xlu0 %1213
        %1217 = vset.pattern.permute.xlu0 0
        %1218 = vperm.xlu0 %1217, %v1192
        %v1219 = vpop.permute.xlu0 %1218
        %1222 = vset.pattern.permute.xlu0 0
        %1223 = vperm.xlu0 %1222, %v1193
        %v1224 = vpop.permute.xlu0 %1223
        %1227 = vset.pattern.permute.xlu0 0
        %1228 = vperm.xlu0 %1227, %v1194
        %v1229 = vpop.permute.xlu0 %1228
        %1232 = vset.pattern.permute.xlu0 0
        %1233 = vperm.xlu0 %1232, %v1195
        %v1234 = vpop.permute.xlu0 %1233
        %1237 = vset.pattern.permute.xlu0 0
        %1238 = vperm.xlu0 %1237, %v1196
        %v1239 = vpop.permute.xlu0 %1238
        %1242 = vset.pattern.permute.xlu0 0
        %1243 = vperm.xlu0 %1242, %v1197
        %v1244 = vpop.permute.xlu0 %1243
        %1247 = vset.pattern.permute.xlu0 0
        %1248 = vperm.xlu0 %1247, %v1198
        %v1249 = vpop.permute.xlu0 %1248
        %1252 = vset.pattern.permute.xlu0 0
        %1253 = vperm.xlu0 %1252, %v1199
        %v1254 = vpop.permute.xlu0 %1253
        %1257 = vset.pattern.permute.xlu0 0
        %1258 = vperm.xlu0 %1257, %v1200
        %v1259 = vpop.permute.xlu0 %1258
        %1262 = vset.pattern.permute.xlu0 0
        %1263 = vperm.xlu0 %1262, %v1201
        %v1264 = vpop.permute.xlu0 %1263
        %1267 = vset.pattern.permute.xlu0 0
        %1268 = vperm.xlu0 %1267, %v1202
        %v1269 = vpop.permute.xlu0 %1268
        %1272 = vset.pattern.permute.xlu0 0
        %1273 = vperm.xlu0 %1272, %v1203
        %v1274 = vpop.permute.xlu0 %1273
        %1277 = vset.pattern.permute.xlu0 0
        %1278 = vperm.xlu0 %1277, %v1204
        %v1279 = vpop.permute.xlu0 %1278
        %1282 = vset.pattern.permute.xlu0 0
        %1283 = vperm.xlu0 %1282, %v1205
        %v1284 = vpop.permute.xlu0 %1283
        %v1302 = vunpack.c.l.b16 %v1174
        %v1303 = vunpack.c.l.b16 %v1175
        %v1304 = vunpack.c.l.b16 %v1176
        %v1305 = vunpack.c.l.b16 %v1177
        %v1306 = vunpack.c.l.b16 %v1178
        %v1307 = vunpack.c.l.b16 %v1179
        %v1308 = vunpack.c.l.b16 %v1180
        %v1309 = vunpack.c.l.b16 %v1181
        %v1310 = vunpack.c.l.b16 %v1182
        %v1311 = vunpack.c.l.b16 %v1183
        %v1312 = vunpack.c.l.b16 %v1184
        %v1313 = vunpack.c.l.b16 %v1185
        %v1314 = vunpack.c.l.b16 %v1186
        %v1315 = vunpack.c.l.b16 %v1187
        %v1316 = vunpack.c.l.b16 %v1188
        %v1317 = vunpack.c.l.b16 %v1189
        %v1318 = vpack.c.b16 %v1303, %v1302
        %v1319 = vpack.c.b16 %v1305, %v1304
        %v1320 = vpack.c.b16 %v1307, %v1306
        %v1321 = vpack.c.b16 %v1309, %v1308
        %v1322 = vpack.c.b16 %v1311, %v1310
        %v1323 = vpack.c.b16 %v1313, %v1312
        %v1324 = vpack.c.b16 %v1315, %v1314
        %v1325 = vpack.c.b16 %v1317, %v1316
        %1334 = vmatprep.subr.bf16.mxu0 %v1143
        %1335 = vmatpush1.bf16.msra.mxu0 %v1142
        %1336 = vmatprep.subr.bf16.mxu0 %v1147
        %1337 = vmatpush1.bf16.msra.mxu0 %v1146
        %1338 = vmatprep.subr.bf16.mxu0 %v1151
        %1339 = vmatpush1.bf16.msra.mxu0 %v1150
        %1340 = vmatprep.subr.bf16.mxu0 %v1155
        %1341 = vmatpush1.bf16.msra.mxu0 %v1154
        %1342 = vmatprep.subr.bf16.mxu0 %v1159
        %1343 = vmatpush1.bf16.msra.mxu0 %v1158
        %1344 = vmatprep.subr.bf16.mxu0 %v1163
        %1345 = vmatpush1.bf16.msra.mxu0 %v1162
        %1346 = vmatprep.subr.bf16.mxu0 %v1167
        %1347 = vmatpush1.bf16.msra.mxu0 %v1166
        %1348 = vmatprep.subr.bf16.mxu0 %v1171
        %1349 = vmatpush1.bf16.msra.mxu0 %v1170
        %1350 = vmatprep.subr.bf16.mxu0 0
        %1351 = vmatpush1.bf16.msra.mxu0 0
        %1352 = vmatprep.subr.bf16.mxu0 0
        %1353 = vmatpush1.bf16.msra.mxu0 0
        %1354 = vmatprep.subr.bf16.mxu0 0
        %1355 = vmatpush1.bf16.msra.mxu0 0
        %1356 = vmatprep.subr.bf16.mxu0 0
        %1357 = vmatpush1.bf16.msra.mxu0 0
        %1358 = vmatprep.subr.bf16.mxu0 0
        %1359 = vmatpush1.bf16.msra.mxu0 0
        %1360 = vmatprep.subr.bf16.mxu0 0
        %1361 = vmatpush1.bf16.msra.mxu0 0
        %1362 = vmatprep.subr.bf16.mxu0 0
        %1363 = vmatpush1.bf16.msra.mxu0 0
        %1364 = vmatprep.subr.bf16.mxu0 0
        %1365 = vmatpush1.bf16.msra.mxu0 0
        %1366 = vmatprep.mubr.bf16.mxu0 0
        %1367 = vmatmul.mubr.bf16.gmra.mrb[0].mxu0 %v1318
        %v1368 = vpop.f32.mrb[0].mxu0
        %v1369 = vadd.f32 %v1209, %v1368
        %v1370 = vpop.f32.mrb[0].mxu0
        %v1371 = vadd.f32 %v1209, %v1370
        %v1372 = vpop.f32.mrb[0].mxu0
        %v1373 = vadd.f32 %v1214, %v1372
        %v1374 = vpop.f32.mrb[0].mxu0
        %v1375 = vadd.f32 %v1214, %v1374
        %1376 = vmatprep.mubr.bf16.mxu0 0
        %1377 = vmatmul.mubr.bf16.gmra.mrb[0].mxu0 %v1319
        %v1378 = vpop.f32.mrb[0].mxu0
        %v1379 = vadd.f32 %v1219, %v1378
        %v1380 = vpop.f32.mrb[0].mxu0
        %v1381 = vadd.f32 %v1219, %v1380
        %v1382 = vpop.f32.mrb[0].mxu0
        %v1383 = vadd.f32 %v1224, %v1382
        %v1384 = vpop.f32.mrb[0].mxu0
        %v1385 = vadd.f32 %v1224, %v1384
        %1386 = vmatprep.mubr.bf16.mxu0 0
        %1387 = vmatmul.mubr.bf16.gmra.mrb[0].mxu0 %v1320
        %v1388 = vpop.f32.mrb[0].mxu0
        %v1389 = vadd.f32 %v1229, %v1388
        %v1390 = vpop.f32.mrb[0].mxu0
        %v1391 = vadd.f32 %v1229, %v1390
        %v1392 = vpop.f32.mrb[0].mxu0
        %v1393 = vadd.f32 %v1234, %v1392
        %v1394 = vpop.f32.mrb[0].mxu0
        %v1395 = vadd.f32 %v1234, %v1394
        %1396 = vmatprep.mubr.bf16.mxu0 0
        %1397 = vmatmul.mubr.bf16.gmra.mrb[0].mxu0 %v1321
        %v1398 = vpop.f32.mrb[0].mxu0
        %v1399 = vadd.f32 %v1239, %v1398
        %v1400 = vpop.f32.mrb[0].mxu0
        %v1401 = vadd.f32 %v1239, %v1400
        %v1402 = vpop.f32.mrb[0].mxu0
        %v1403 = vadd.f32 %v1244, %v1402
        %v1404 = vpop.f32.mrb[0].mxu0
        %v1405 = vadd.f32 %v1244, %v1404
        %1406 = vmatprep.mubr.bf16.mxu0 0
        %1407 = vmatmul.mubr.bf16.gmra.mrb[0].mxu0 %v1322
        %v1408 = vpop.f32.mrb[0].mxu0
        %v1409 = vadd.f32 %v1249, %v1408
        %v1410 = vpop.f32.mrb[0].mxu0
        %v1411 = vadd.f32 %v1249, %v1410
        %v1412 = vpop.f32.mrb[0].mxu0
        %v1413 = vadd.f32 %v1254, %v1412
        %v1414 = vpop.f32.mrb[0].mxu0
        %v1415 = vadd.f32 %v1254, %v1414
        %1416 = vmatprep.mubr.bf16.mxu0 0
        %1417 = vmatmul.mubr.bf16.gmra.mrb[0].mxu0 %v1323
        %v1418 = vpop.f32.mrb[0].mxu0
        %v1419 = vadd.f32 %v1259, %v1418
        %v1420 = vpop.f32.mrb[0].mxu0
        %v1421 = vadd.f32 %v1259, %v1420
        %v1422 = vpop.f32.mrb[0].mxu0
        %v1423 = vadd.f32 %v1264, %v1422
        %v1424 = vpop.f32.mrb[0].mxu0
        %v1425 = vadd.f32 %v1264, %v1424
        %1426 = vmatprep.mubr.bf16.mxu0 0
        %1427 = vmatmul.mubr.bf16.gmra.mrb[0].mxu0 %v1324
        %v1428 = vpop.f32.mrb[0].mxu0
        %v1429 = vadd.f32 %v1269, %v1428
        %v1430 = vpop.f32.mrb[0].mxu0
        %v1431 = vadd.f32 %v1269, %v1430
        %v1432 = vpop.f32.mrb[0].mxu0
        %v1433 = vadd.f32 %v1274, %v1432
        %v1434 = vpop.f32.mrb[0].mxu0
        %v1435 = vadd.f32 %v1274, %v1434
        %1436 = vmatprep.mubr.bf16.mxu0 0
        %1437 = vmatmul.mubr.bf16.gmra.mrb[0].mxu0 %v1325
        %v1438 = vpop.f32.mrb[0].mxu0
        %v1439 = vadd.f32 %v1279, %v1438
        %v1440 = vpop.f32.mrb[0].mxu0
        %v1441 = vadd.f32 %v1279, %v1440
        %v1442 = vpop.f32.mrb[0].mxu0
        %v1443 = vadd.f32 %v1284, %v1442
        %v1444 = vpop.f32.mrb[0].mxu0
        %v1445 = vadd.f32 %v1284, %v1444
        %1446 = vdwg.mxu0
        %1447 = vmatprep.subr.bf16.mxu0 %v1145
        %1448 = vmatpush1.bf16.msra.mxu0 %v1144
        %1449 = vmatprep.subr.bf16.mxu0 %v1149
        %1450 = vmatpush1.bf16.msra.mxu0 %v1148
        %1451 = vmatprep.subr.bf16.mxu0 %v1153
        %1452 = vmatpush1.bf16.msra.mxu0 %v1152
        %1453 = vmatprep.subr.bf16.mxu0 %v1157
        %1454 = vmatpush1.bf16.msra.mxu0 %v1156
        %1455 = vmatprep.subr.bf16.mxu0 %v1161
        %1456 = vmatpush1.bf16.msra.mxu0 %v1160
        %1457 = vmatprep.subr.bf16.mxu0 %v1165
        %1458 = vmatpush1.bf16.msra.mxu0 %v1164
        %1459 = vmatprep.subr.bf16.mxu0 %v1169
        %1460 = vmatpush1.bf16.msra.mxu0 %v1168
        %1461 = vmatprep.subr.bf16.mxu0 %v1173
        %1462 = vmatpush1.bf16.msra.mxu0 %v1172
        %1463 = vmatprep.subr.bf16.mxu0 0
        %1464 = vmatpush1.bf16.msra.mxu0 0
        %1465 = vmatprep.subr.bf16.mxu0 0
        %1466 = vmatpush1.bf16.msra.mxu0 0
        %1467 = vmatprep.subr.bf16.mxu0 0
        %1468 = vmatpush1.bf16.msra.mxu0 0
        %1469 = vmatprep.subr.bf16.mxu0 0
        %1470 = vmatpush1.bf16.msra.mxu0 0
        %1471 = vmatprep.subr.bf16.mxu0 0
        %1472 = vmatpush1.bf16.msra.mxu0 0
        %1473 = vmatprep.subr.bf16.mxu0 0
        %1474 = vmatpush1.bf16.msra.mxu0 0
        %1475 = vmatprep.subr.bf16.mxu0 0
        %1476 = vmatpush1.bf16.msra.mxu0 0
        %1477 = vmatprep.subr.bf16.mxu0 0
        %1478 = vmatpush1.bf16.msra.mxu0 0
        %1479 = vmatprep.mubr.bf16.mxu0 0
        %1480 = vmatmul.mubr.bf16.gmra.mrb[0].mxu0 %v1318
        %v1481 = vpop.f32.mrb[0].mxu0
        %v1482 = vadd.f32 %v1209, %v1481
        %v1483 = vpop.f32.mrb[0].mxu0
        %v1484 = vadd.f32 %v1209, %v1483
        %v1485 = vpop.f32.mrb[0].mxu0
        %v1486 = vadd.f32 %v1214, %v1485
        %v1487 = vpop.f32.mrb[0].mxu0
        %v1488 = vadd.f32 %v1214, %v1487
        %1489 = vmatprep.mubr.bf16.mxu0 0
        %1490 = vmatmul.mubr.bf16.gmra.mrb[0].mxu0 %v1319
        %v1491 = vpop.f32.mrb[0].mxu0
        %v1492 = vadd.f32 %v1219, %v1491
        %v1493 = vpop.f32.mrb[0].mxu0
        %v1494 = vadd.f32 %v1219, %v1493
        %v1495 = vpop.f32.mrb[0].mxu0
        %v1496 = vadd.f32 %v1224, %v1495
        %v1497 = vpop.f32.mrb[0].mxu0
        %v1498 = vadd.f32 %v1224, %v1497
        %1499 = vmatprep.mubr.bf16.mxu0 0
        %1500 = vmatmul.mubr.bf16.gmra.mrb[0].mxu0 %v1320
        %v1501 = vpop.f32.mrb[0].mxu0
        %v1502 = vadd.f32 %v1229, %v1501
        %v1503 = vpop.f32.mrb[0].mxu0
        %v1504 = vadd.f32 %v1229, %v1503
        %v1505 = vpop.f32.mrb[0].mxu0
        %v1506 = vadd.f32 %v1234, %v1505
        %v1507 = vpop.f32.mrb[0].mxu0
        %v1508 = vadd.f32 %v1234, %v1507
        %1509 = vmatprep.mubr.bf16.mxu0 0
        %1510 = vmatmul.mubr.bf16.gmra.mrb[0].mxu0 %v1321
        %v1511 = vpop.f32.mrb[0].mxu0
        %v1512 = vadd.f32 %v1239, %v1511
        %v1513 = vpop.f32.mrb[0].mxu0
        %v1514 = vadd.f32 %v1239, %v1513
        %v1515 = vpop.f32.mrb[0].mxu0
        %v1516 = vadd.f32 %v1244, %v1515
        %v1517 = vpop.f32.mrb[0].mxu0
        %v1518 = vadd.f32 %v1244, %v1517
        %1519 = vmatprep.mubr.bf16.mxu0 0
        %1520 = vmatmul.mubr.bf16.gmra.mrb[0].mxu0 %v1322
        %v1521 = vpop.f32.mrb[0].mxu0
        %v1522 = vadd.f32 %v1249, %v1521
        %v1523 = vpop.f32.mrb[0].mxu0
        %v1524 = vadd.f32 %v1249, %v1523
        %v1525 = vpop.f32.mrb[0].mxu0
        %v1526 = vadd.f32 %v1254, %v1525
        %v1527 = vpop.f32.mrb[0].mxu0
        %v1528 = vadd.f32 %v1254, %v1527
        %1529 = vmatprep.mubr.bf16.mxu0 0
        %1530 = vmatmul.mubr.bf16.gmra.mrb[0].mxu0 %v1323
        %v1531 = vpop.f32.mrb[0].mxu0
        %v1532 = vadd.f32 %v1259, %v1531
        %v1533 = vpop.f32.mrb[0].mxu0
        %v1534 = vadd.f32 %v1259, %v1533
        %v1535 = vpop.f32.mrb[0].mxu0
        %v1536 = vadd.f32 %v1264, %v1535
        %v1537 = vpop.f32.mrb[0].mxu0
        %v1538 = vadd.f32 %v1264, %v1537
        %1539 = vmatprep.mubr.bf16.mxu0 0
        %1540 = vmatmul.mubr.bf16.gmra.mrb[0].mxu0 %v1324
        %v1541 = vpop.f32.mrb[0].mxu0
        %v1542 = vadd.f32 %v1269, %v1541
        %v1543 = vpop.f32.mrb[0].mxu0
        %v1544 = vadd.f32 %v1269, %v1543
        %v1545 = vpop.f32.mrb[0].mxu0
        %v1546 = vadd.f32 %v1274, %v1545
        %v1547 = vpop.f32.mrb[0].mxu0
        %v1548 = vadd.f32 %v1274, %v1547
        %1549 = vmatprep.mubr.bf16.mxu0 0
        %1550 = vmatmul.mubr.bf16.gmra.mrb[0].mxu0 %v1325
        %v1551 = vpop.f32.mrb[0].mxu0
        %v1552 = vadd.f32 %v1279, %v1551
        %v1553 = vpop.f32.mrb[0].mxu0
        %v1554 = vadd.f32 %v1279, %v1553
        %v1555 = vpop.f32.mrb[0].mxu0
        %v1556 = vadd.f32 %v1284, %v1555
        %v1557 = vpop.f32.mrb[0].mxu0
        %v1558 = vadd.f32 %v1284, %v1557
        %1559 = vdwg.mxu0
        %v1560 = vmax.f32 %v1369, 0.0
        %v1561 = vmax.f32 %v1371, 0.0
        %v1562 = vmax.f32 %v1482, 0.0
        %v1563 = vmax.f32 %v1484, 0.0
        %v1564 = vmax.f32 %v1373, 0.0
        %v1565 = vmax.f32 %v1375, 0.0
        %v1566 = vmax.f32 %v1486, 0.0
        %v1567 = vmax.f32 %v1488, 0.0
        %v1568 = vmax.f32 %v1379, 0.0
        %v1569 = vmax.f32 %v1381, 0.0
        %v1570 = vmax.f32 %v1492, 0.0
        %v1571 = vmax.f32 %v1494, 0.0
        %v1572 = vmax.f32 %v1383, 0.0
        %v1573 = vmax.f32 %v1385, 0.0
        %v1574 = vmax.f32 %v1496, 0.0
        %v1575 = vmax.f32 %v1498, 0.0
        %v1576 = vmax.f32 %v1389, 0.0
        %v1577 = vmax.f32 %v1391, 0.0
        %v1578 = vmax.f32 %v1502, 0.0
        %v1579 = vmax.f32 %v1504, 0.0
        %v1580 = vmax.f32 %v1393, 0.0
        %v1581 = vmax.f32 %v1395, 0.0
        %v1582 = vmax.f32 %v1506, 0.0
        %v1583 = vmax.f32 %v1508, 0.0
        %v1584 = vmax.f32 %v1399, 0.0
        %v1585 = vmax.f32 %v1401, 0.0
        %v1586 = vmax.f32 %v1512, 0.0
        %v1587 = vmax.f32 %v1514, 0.0
        %v1588 = vmax.f32 %v1403, 0.0
        %v1589 = vmax.f32 %v1405, 0.0
        %v1590 = vmax.f32 %v1516, 0.0
        %v1591 = vmax.f32 %v1518, 0.0
        %v1592 = vmax.f32 %v1409, 0.0
        %v1593 = vmax.f32 %v1411, 0.0
        %v1594 = vmax.f32 %v1522, 0.0
        %v1595 = vmax.f32 %v1524, 0.0
        %v1596 = vmax.f32 %v1413, 0.0
        %v1597 = vmax.f32 %v1415, 0.0
        %v1598 = vmax.f32 %v1526, 0.0
        %v1599 = vmax.f32 %v1528, 0.0
        %v1600 = vmax.f32 %v1419, 0.0
        %v1601 = vmax.f32 %v1421, 0.0
        %v1602 = vmax.f32 %v1532, 0.0
        %v1603 = vmax.f32 %v1534, 0.0
        %v1604 = vmax.f32 %v1423, 0.0
        %v1605 = vmax.f32 %v1425, 0.0
        %v1606 = vmax.f32 %v1536, 0.0
        %v1607 = vmax.f32 %v1538, 0.0
        %v1608 = vmax.f32 %v1429, 0.0
        %v1609 = vmax.f32 %v1431, 0.0
        %v1610 = vmax.f32 %v1542, 0.0
        %v1611 = vmax.f32 %v1544, 0.0
        %v1612 = vmax.f32 %v1433, 0.0
        %v1613 = vmax.f32 %v1435, 0.0
        %v1614 = vmax.f32 %v1546, 0.0
        %v1615 = vmax.f32 %v1548, 0.0
        %v1616 = vmax.f32 %v1439, 0.0
        %v1617 = vmax.f32 %v1441, 0.0
        %v1618 = vmax.f32 %v1552, 0.0
        %v1619 = vmax.f32 %v1554, 0.0
        %v1620 = vmax.f32 %v1443, 0.0
        %v1621 = vmax.f32 %v1445, 0.0
        %v1622 = vmax.f32 %v1556, 0.0
        %v1623 = vmax.f32 %v1558, 0.0
        %v1624 = vpack.c.bf16 %v1564, %v1560
        %v1625 = vpack.c.bf16 %v1565, %v1561
        %v1626 = vpack.c.bf16 %v1566, %v1562
        %v1627 = vpack.c.bf16 %v1567, %v1563
        %v1628 = vpack.c.bf16 %v1572, %v1568
        %v1629 = vpack.c.bf16 %v1573, %v1569
        %v1630 = vpack.c.bf16 %v1574, %v1570
        %v1631 = vpack.c.bf16 %v1575, %v1571
        %v1632 = vpack.c.bf16 %v1580, %v1576
        %v1633 = vpack.c.bf16 %v1581, %v1577
        %v1634 = vpack.c.bf16 %v1582, %v1578
        %v1635 = vpack.c.bf16 %v1583, %v1579
        %v1636 = vpack.c.bf16 %v1588, %v1584
        %v1637 = vpack.c.bf16 %v1589, %v1585
        %v1638 = vpack.c.bf16 %v1590, %v1586
        %v1639 = vpack.c.bf16 %v1591, %v1587
        %v1640 = vpack.c.bf16 %v1596, %v1592
        %v1641 = vpack.c.bf16 %v1597, %v1593
        %v1642 = vpack.c.bf16 %v1598, %v1594
        %v1643 = vpack.c.bf16 %v1599, %v1595
        %v1644 = vpack.c.bf16 %v1604, %v1600
        %v1645 = vpack.c.bf16 %v1605, %v1601
        %v1646 = vpack.c.bf16 %v1606, %v1602
        %v1647 = vpack.c.bf16 %v1607, %v1603
        %v1648 = vpack.c.bf16 %v1612, %v1608
        %v1649 = vpack.c.bf16 %v1613, %v1609
        %v1650 = vpack.c.bf16 %v1614, %v1610
        %v1651 = vpack.c.bf16 %v1615, %v1611
        %v1652 = vpack.c.bf16 %v1620, %v1616
        %v1653 = vpack.c.bf16 %v1621, %v1617
        %v1654 = vpack.c.bf16 %v1622, %v1618
        %v1655 = vpack.c.bf16 %v1623, %v1619
        %v1656 = vld [vmem:[%s5] sm:$0xf]
        %v1657 = vld [vmem:[%s5 + $0x4] sm:$0xf]
        %v1658 = vld [vmem:[%s5 + $0x8] sm:$0xf]
        %v1659 = vld [vmem:[%s5 + $0xc] sm:$0xf]
        %v1660 = vld [vmem:[%s5 + $0x10] sm:$0xf]
        %v1661 = vld [vmem:[%s5 + $0x14] sm:$0xf]
        %v1662 = vld [vmem:[%s5 + $0x18] sm:$0xf]
        %v1663 = vld [vmem:[%s5 + $0x1c] sm:$0xf]
        %v1664 = vld [vmem:[%s5 + $0x20] sm:$0xf]
        %v1665 = vld [vmem:[%s5 + $0x24] sm:$0xf]
        %v1666 = vld [vmem:[%s5 + $0x28] sm:$0xf]
        %v1667 = vld [vmem:[%s5 + $0x2c] sm:$0xf]
        %v1668 = vld [vmem:[%s5 + $0x30] sm:$0xf]
        %v1669 = vld [vmem:[%s5 + $0x34] sm:$0xf]
        %v1670 = vld [vmem:[%s5 + $0x38] sm:$0xf]
        %v1671 = vld [vmem:[%s5 + $0x3c] sm:$0xf]
        %v1672 = vld [vmem:[%s6] sm:$0xff]
        %v1673 = vld [vmem:[%s6 + $0x8] sm:$0xff]
        %v1674 = vld [vmem:[%s6 + $0x10] sm:$0xff]
        %v1675 = vld [vmem:[%s6 + $0x18] sm:$0xff]
        %v1676 = vld [vmem:[%s6 + $0x20] sm:$0xff]
        %v1677 = vld [vmem:[%s6 + $0x28] sm:$0xff]
        %v1678 = vld [vmem:[%s6 + $0x30] sm:$0xff]
        %v1679 = vld [vmem:[%s6 + $0x38] sm:$0xff]
        %v1680 = vld [vmem:[%s6 + $0x40] sm:$0xff]
        %v1681 = vld [vmem:[%s6 + $0x48] sm:$0xff]
        %v1682 = vld [vmem:[%s6 + $0x50] sm:$0xff]
        %v1683 = vld [vmem:[%s6 + $0x58] sm:$0xff]
        %v1684 = vld [vmem:[%s6 + $0x60] sm:$0xff]
        %v1685 = vld [vmem:[%s6 + $0x68] sm:$0xff]
        %v1686 = vld [vmem:[%s6 + $0x70] sm:$0xff]
        %v1687 = vld [vmem:[%s6 + $0x78] sm:$0xff]
        %1689 = vset.pattern.permute.xlu0 0
        %1690 = vperm.xlu0 %1689, %v1672
        %v1691 = vpop.permute.xlu0 %1690
        %1694 = vset.pattern.permute.xlu0 0
        %1695 = vperm.xlu0 %1694, %v1673
        %v1696 = vpop.permute.xlu0 %1695
        %1699 = vset.pattern.permute.xlu0 0
        %1700 = vperm.xlu0 %1699, %v1674
        %v1701 = vpop.permute.xlu0 %1700
        %1704 = vset.pattern.permute.xlu0 0
        %1705 = vperm.xlu0 %1704, %v1675
        %v1706 = vpop.permute.xlu0 %1705
        %1709 = vset.pattern.permute.xlu0 0
        %1710 = vperm.xlu0 %1709, %v1676
        %v1711 = vpop.permute.xlu0 %1710
        %1714 = vset.pattern.permute.xlu0 0
        %1715 = vperm.xlu0 %1714, %v1677
        %v1716 = vpop.permute.xlu0 %1715
        %1719 = vset.pattern.permute.xlu0 0
        %1720 = vperm.xlu0 %1719, %v1678
        %v1721 = vpop.permute.xlu0 %1720
        %1724 = vset.pattern.permute.xlu0 0
        %1725 = vperm.xlu0 %1724, %v1679
        %v1726 = vpop.permute.xlu0 %1725
        %1729 = vset.pattern.permute.xlu0 0
        %1730 = vperm.xlu0 %1729, %v1680
        %v1731 = vpop.permute.xlu0 %1730
        %1734 = vset.pattern.permute.xlu0 0
        %1735 = vperm.xlu0 %1734, %v1681
        %v1736 = vpop.permute.xlu0 %1735
        %1739 = vset.pattern.permute.xlu0 0
        %1740 = vperm.xlu0 %1739, %v1682
        %v1741 = vpop.permute.xlu0 %1740
        %1744 = vset.pattern.permute.xlu0 0
        %1745 = vperm.xlu0 %1744, %v1683
        %v1746 = vpop.permute.xlu0 %1745
        %1749 = vset.pattern.permute.xlu0 0
        %1750 = vperm.xlu0 %1749, %v1684
        %v1751 = vpop.permute.xlu0 %1750
        %1754 = vset.pattern.permute.xlu0 0
        %1755 = vperm.xlu0 %1754, %v1685
        %v1756 = vpop.permute.xlu0 %1755
        %1759 = vset.pattern.permute.xlu0 0
        %1760 = vperm.xlu0 %1759, %v1686
        %v1761 = vpop.permute.xlu0 %1760
        %1764 = vset.pattern.permute.xlu0 0
        %1765 = vperm.xlu0 %1764, %v1687
        %v1766 = vpop.permute.xlu0 %1765
        %v1784 = vunpack.c.l.b16 %v1656
        %v1785 = vunpack.c.l.b16 %v1657
        %v1786 = vunpack.c.l.b16 %v1658
        %v1787 = vunpack.c.l.b16 %v1659
        %v1788 = vunpack.c.l.b16 %v1660
        %v1789 = vunpack.c.l.b16 %v1661
        %v1790 = vunpack.c.l.b16 %v1662
        %v1791 = vunpack.c.l.b16 %v1663
        %v1792 = vunpack.c.l.b16 %v1664
        %v1793 = vunpack.c.l.b16 %v1665
        %v1794 = vunpack.c.l.b16 %v1666
        %v1795 = vunpack.c.l.b16 %v1667
        %v1796 = vunpack.c.l.b16 %v1668
        %v1797 = vunpack.c.l.b16 %v1669
        %v1798 = vunpack.c.l.b16 %v1670
        %v1799 = vunpack.c.l.b16 %v1671
        %v1800 = vpack.c.b16 %v1785, %v1784
        %v1801 = vpack.c.b16 %v1787, %v1786
        %v1802 = vpack.c.b16 %v1789, %v1788
        %v1803 = vpack.c.b16 %v1791, %v1790
        %v1804 = vpack.c.b16 %v1793, %v1792
        %v1805 = vpack.c.b16 %v1795, %v1794
        %v1806 = vpack.c.b16 %v1797, %v1796
        %v1807 = vpack.c.b16 %v1799, %v1798
        %1816 = vmatprep.subr.bf16.mxu0 %v1625
        %1817 = vmatpush1.bf16.msra.mxu0 %v1624
        %1818 = vmatprep.subr.bf16.mxu0 %v1629
        %1819 = vmatpush1.bf16.msra.mxu0 %v1628
        %1820 = vmatprep.subr.bf16.mxu0 %v1633
        %1821 = vmatpush1.bf16.msra.mxu0 %v1632
        %1822 = vmatprep.subr.bf16.mxu0 %v1637
        %1823 = vmatpush1.bf16.msra.mxu0 %v1636
        %1824 = vmatprep.subr.bf16.mxu0 %v1641
        %1825 = vmatpush1.bf16.msra.mxu0 %v1640
        %1826 = vmatprep.subr.bf16.mxu0 %v1645
        %1827 = vmatpush1.bf16.msra.mxu0 %v1644
        %1828 = vmatprep.subr.bf16.mxu0 %v1649
        %1829 = vmatpush1.bf16.msra.mxu0 %v1648
        %1830 = vmatprep.subr.bf16.mxu0 %v1653
        %1831 = vmatpush1.bf16.msra.mxu0 %v1652
        %1832 = vmatprep.subr.bf16.mxu0 0
        %1833 = vmatpush1.bf16.msra.mxu0 0
        %1834 = vmatprep.subr.bf16.mxu0 0
        %1835 = vmatpush1.bf16.msra.mxu0 0
        %1836 = vmatprep.subr.bf16.mxu0 0
        %1837 = vmatpush1.bf16.msra.mxu0 0
        %1838 = vmatprep.subr.bf16.mxu0 0
        %1839 = vmatpush1.bf16.msra.mxu0 0
        %1840 = vmatprep.subr.bf16.mxu0 0
        %1841 = vmatpush1.bf16.msra.mxu0 0
        %1842 = vmatprep.subr.bf16.mxu0 0
        %1843 = vmatpush1.bf16.msra.mxu0 0
        %1844 = vmatprep.subr.bf16.mxu0 0
        %1845 = vmatpush1.bf16.msra.mxu0 0
        %1846 = vmatprep.subr.bf16.mxu0 0
        %1847 = vmatpush1.bf16.msra.mxu0 0
        %1848 = vmatprep.mubr.bf16.mxu0 0
        %1849 = vmatmul.mubr.bf16.gmra.mrb[0].mxu0 %v1800
        %v1850 = vpop.f32.mrb[0].mxu0
        %v1851 = vadd.f32 %v1691, %v1850
        %v1852 = vpop.f32.mrb[0].mxu0
        %v1853 = vadd.f32 %v1691, %v1852
        %v1854 = vpop.f32.mrb[0].mxu0
        %v1855 = vadd.f32 %v1696, %v1854
        %v1856 = vpop.f32.mrb[0].mxu0
        %v1857 = vadd.f32 %v1696, %v1856
        %1858 = vmatprep.mubr.bf16.mxu0 0
        %1859 = vmatmul.mubr.bf16.gmra.mrb[0].mxu0 %v1801
        %v1860 = vpop.f32.mrb[0].mxu0
        %v1861 = vadd.f32 %v1701, %v1860
        %v1862 = vpop.f32.mrb[0].mxu0
        %v1863 = vadd.f32 %v1701, %v1862
        %v1864 = vpop.f32.mrb[0].mxu0
        %v1865 = vadd.f32 %v1706, %v1864
        %v1866 = vpop.f32.mrb[0].mxu0
        %v1867 = vadd.f32 %v1706, %v1866
        %1868 = vmatprep.mubr.bf16.mxu0 0
        %1869 = vmatmul.mubr.bf16.gmra.mrb[0].mxu0 %v1802
        %v1870 = vpop.f32.mrb[0].mxu0
        %v1871 = vadd.f32 %v1711, %v1870
        %v1872 = vpop.f32.mrb[0].mxu0
        %v1873 = vadd.f32 %v1711, %v1872
        %v1874 = vpop.f32.mrb[0].mxu0
        %v1875 = vadd.f32 %v1716, %v1874
        %v1876 = vpop.f32.mrb[0].mxu0
        %v1877 = vadd.f32 %v1716, %v1876
        %1878 = vmatprep.mubr.bf16.mxu0 0
        %1879 = vmatmul.mubr.bf16.gmra.mrb[0].mxu0 %v1803
        %v1880 = vpop.f32.mrb[0].mxu0
        %v1881 = vadd.f32 %v1721, %v1880
        %v1882 = vpop.f32.mrb[0].mxu0
        %v1883 = vadd.f32 %v1721, %v1882
        %v1884 = vpop.f32.mrb[0].mxu0
        %v1885 = vadd.f32 %v1726, %v1884
        %v1886 = vpop.f32.mrb[0].mxu0
        %v1887 = vadd.f32 %v1726, %v1886
        %1888 = vmatprep.mubr.bf16.mxu0 0
        %1889 = vmatmul.mubr.bf16.gmra.mrb[0].mxu0 %v1804
        %v1890 = vpop.f32.mrb[0].mxu0
        %v1891 = vadd.f32 %v1731, %v1890
        %v1892 = vpop.f32.mrb[0].mxu0
        %v1893 = vadd.f32 %v1731, %v1892
        %v1894 = vpop.f32.mrb[0].mxu0
        %v1895 = vadd.f32 %v1736, %v1894
        %v1896 = vpop.f32.mrb[0].mxu0
        %v1897 = vadd.f32 %v1736, %v1896
        %1898 = vmatprep.mubr.bf16.mxu0 0
        %1899 = vmatmul.mubr.bf16.gmra.mrb[0].mxu0 %v1805
        %v1900 = vpop.f32.mrb[0].mxu0
        %v1901 = vadd.f32 %v1741, %v1900
        %v1902 = vpop.f32.mrb[0].mxu0
        %v1903 = vadd.f32 %v1741, %v1902
        %v1904 = vpop.f32.mrb[0].mxu0
        %v1905 = vadd.f32 %v1746, %v1904
        %v1906 = vpop.f32.mrb[0].mxu0
        %v1907 = vadd.f32 %v1746, %v1906
        %1908 = vmatprep.mubr.bf16.mxu0 0
        %1909 = vmatmul.mubr.bf16.gmra.mrb[0].mxu0 %v1806
        %v1910 = vpop.f32.mrb[0].mxu0
        %v1911 = vadd.f32 %v1751, %v1910
        %v1912 = vpop.f32.mrb[0].mxu0
        %v1913 = vadd.f32 %v1751, %v1912
        %v1914 = vpop.f32.mrb[0].mxu0
        %v1915 = vadd.f32 %v1756, %v1914
        %v1916 = vpop.f32.mrb[0].mxu0
        %v1917 = vadd.f32 %v1756, %v1916
        %1918 = vmatprep.mubr.bf16.mxu0 0
        %1919 = vmatmul.mubr.bf16.gmra.mrb[0].mxu0 %v1807
        %v1920 = vpop.f32.mrb[0].mxu0
        %v1921 = vadd.f32 %v1761, %v1920
        %v1922 = vpop.f32.mrb[0].mxu0
        %v1923 = vadd.f32 %v1761, %v1922
        %v1924 = vpop.f32.mrb[0].mxu0
        %v1925 = vadd.f32 %v1766, %v1924
        %v1926 = vpop.f32.mrb[0].mxu0
        %v1927 = vadd.f32 %v1766, %v1926
        %1928 = vdwg.mxu0
        %1929 = vmatprep.subr.bf16.mxu0 %v1627
        %1930 = vmatpush1.bf16.msra.mxu0 %v1626
        %1931 = vmatprep.subr.bf16.mxu0 %v1631
        %1932 = vmatpush1.bf16.msra.mxu0 %v1630
        %1933 = vmatprep.subr.bf16.mxu0 %v1635
        %1934 = vmatpush1.bf16.msra.mxu0 %v1634
        %1935 = vmatprep.subr.bf16.mxu0 %v1639
        %1936 = vmatpush1.bf16.msra.mxu0 %v1638
        %1937 = vmatprep.subr.bf16.mxu0 %v1643
        %1938 = vmatpush1.bf16.msra.mxu0 %v1642
        %1939 = vmatprep.subr.bf16.mxu0 %v1647
        %1940 = vmatpush1.bf16.msra.mxu0 %v1646
        %1941 = vmatprep.subr.bf16.mxu0 %v1651
        %1942 = vmatpush1.bf16.msra.mxu0 %v1650
        %1943 = vmatprep.subr.bf16.mxu0 %v1655
        %1944 = vmatpush1.bf16.msra.mxu0 %v1654
        %1945 = vmatprep.subr.bf16.mxu0 0
        %1946 = vmatpush1.bf16.msra.mxu0 0
        %1947 = vmatprep.subr.bf16.mxu0 0
        %1948 = vmatpush1.bf16.msra.mxu0 0
        %1949 = vmatprep.subr.bf16.mxu0 0
        %1950 = vmatpush1.bf16.msra.mxu0 0
        %1951 = vmatprep.subr.bf16.mxu0 0
        %1952 = vmatpush1.bf16.msra.mxu0 0
        %1953 = vmatprep.subr.bf16.mxu0 0
        %1954 = vmatpush1.bf16.msra.mxu0 0
        %1955 = vmatprep.subr.bf16.mxu0 0
        %1956 = vmatpush1.bf16.msra.mxu0 0
        %1957 = vmatprep.subr.bf16.mxu0 0
        %1958 = vmatpush1.bf16.msra.mxu0 0
        %1959 = vmatprep.subr.bf16.mxu0 0
        %1960 = vmatpush1.bf16.msra.mxu0 0
        %1961 = vmatprep.mubr.bf16.mxu0 0
        %1962 = vmatmul.mubr.bf16.gmra.mrb[0].mxu0 %v1800
        %v1963 = vpop.f32.mrb[0].mxu0
        %v1964 = vadd.f32 %v1691, %v1963
        %v1965 = vpop.f32.mrb[0].mxu0
        %v1966 = vadd.f32 %v1691, %v1965
        %v1967 = vpop.f32.mrb[0].mxu0
        %v1968 = vadd.f32 %v1696, %v1967
        %v1969 = vpop.f32.mrb[0].mxu0
        %v1970 = vadd.f32 %v1696, %v1969
        %1971 = vmatprep.mubr.bf16.mxu0 0
        %1972 = vmatmul.mubr.bf16.gmra.mrb[0].mxu0 %v1801
        %v1973 = vpop.f32.mrb[0].mxu0
        %v1974 = vadd.f32 %v1701, %v1973
        %v1975 = vpop.f32.mrb[0].mxu0
        %v1976 = vadd.f32 %v1701, %v1975
        %v1977 = vpop.f32.mrb[0].mxu0
        %v1978 = vadd.f32 %v1706, %v1977
        %v1979 = vpop.f32.mrb[0].mxu0
        %v1980 = vadd.f32 %v1706, %v1979
        %1981 = vmatprep.mubr.bf16.mxu0 0
        %1982 = vmatmul.mubr.bf16.gmra.mrb[0].mxu0 %v1802
        %v1983 = vpop.f32.mrb[0].mxu0
        %v1984 = vadd.f32 %v1711, %v1983
        %v1985 = vpop.f32.mrb[0].mxu0
        %v1986 = vadd.f32 %v1711, %v1985
        %v1987 = vpop.f32.mrb[0].mxu0
        %v1988 = vadd.f32 %v1716, %v1987
        %v1989 = vpop.f32.mrb[0].mxu0
        %v1990 = vadd.f32 %v1716, %v1989
        %1991 = vmatprep.mubr.bf16.mxu0 0
        %1992 = vmatmul.mubr.bf16.gmra.mrb[0].mxu0 %v1803
        %v1993 = vpop.f32.mrb[0].mxu0
        %v1994 = vadd.f32 %v1721, %v1993
        %v1995 = vpop.f32.mrb[0].mxu0
        %v1996 = vadd.f32 %v1721, %v1995
        %v1997 = vpop.f32.mrb[0].mxu0
        %v1998 = vadd.f32 %v1726, %v1997
        %v1999 = vpop.f32.mrb[0].mxu0
        %v2000 = vadd.f32 %v1726, %v1999
        %2001 = vmatprep.mubr.bf16.mxu0 0
        %2002 = vmatmul.mubr.bf16.gmra.mrb[0].mxu0 %v1804
        %v2003 = vpop.f32.mrb[0].mxu0
        %v2004 = vadd.f32 %v1731, %v2003
        %v2005 = vpop.f32.mrb[0].mxu0
        %v2006 = vadd.f32 %v1731, %v2005
        %v2007 = vpop.f32.mrb[0].mxu0
        %v2008 = vadd.f32 %v1736, %v2007
        %v2009 = vpop.f32.mrb[0].mxu0
        %v2010 = vadd.f32 %v1736, %v2009
        %2011 = vmatprep.mubr.bf16.mxu0 0
        %2012 = vmatmul.mubr.bf16.gmra.mrb[0].mxu0 %v1805
        %v2013 = vpop.f32.mrb[0].mxu0
        %v2014 = vadd.f32 %v1741, %v2013
        %v2015 = vpop.f32.mrb[0].mxu0
        %v2016 = vadd.f32 %v1741, %v2015
        %v2017 = vpop.f32.mrb[0].mxu0
        %v2018 = vadd.f32 %v1746, %v2017
        %v2019 = vpop.f32.mrb[0].mxu0
        %v2020 = vadd.f32 %v1746, %v2019
        %2021 = vmatprep.mubr.bf16.mxu0 0
        %2022 = vmatmul.mubr.bf16.gmra.mrb[0].mxu0 %v1806
        %v2023 = vpop.f32.mrb[0].mxu0
        %v2024 = vadd.f32 %v1751, %v2023
        %v2025 = vpop.f32.mrb[0].mxu0
        %v2026 = vadd.f32 %v1751, %v2025
        %v2027 = vpop.f32.mrb[0].mxu0
        %v2028 = vadd.f32 %v1756, %v2027
        %v2029 = vpop.f32.mrb[0].mxu0
        %v2030 = vadd.f32 %v1756, %v2029
        %2031 = vmatprep.mubr.bf16.mxu0 0
        %2032 = vmatmul.mubr.bf16.gmra.mrb[0].mxu0 %v1807
        %v2033 = vpop.f32.mrb[0].mxu0
        %v2034 = vadd.f32 %v1761, %v2033
        %v2035 = vpop.f32.mrb[0].mxu0
        %v2036 = vadd.f32 %v1761, %v2035
        %v2037 = vpop.f32.mrb[0].mxu0
        %v2038 = vadd.f32 %v1766, %v2037
        %v2039 = vpop.f32.mrb[0].mxu0
        %v2040 = vadd.f32 %v1766, %v2039
        %2041 = vdwg.mxu0
        %v2042 = vmax.f32 %v1851, 0.0
        %v2043 = vmax.f32 %v1853, 0.0
        %v2044 = vmax.f32 %v1964, 0.0
        %v2045 = vmax.f32 %v1966, 0.0
        %v2046 = vmax.f32 %v1855, 0.0
        %v2047 = vmax.f32 %v1857, 0.0
        %v2048 = vmax.f32 %v1968, 0.0
        %v2049 = vmax.f32 %v1970, 0.0
        %v2050 = vmax.f32 %v1861, 0.0
        %v2051 = vmax.f32 %v1863, 0.0
        %v2052 = vmax.f32 %v1974, 0.0
        %v2053 = vmax.f32 %v1976, 0.0
        %v2054 = vmax.f32 %v1865, 0.0
        %v2055 = vmax.f32 %v1867, 0.0
        %v2056 = vmax.f32 %v1978, 0.0
        %v2057 = vmax.f32 %v1980, 0.0
        %v2058 = vmax.f32 %v1871, 0.0
        %v2059 = vmax.f32 %v1873, 0.0
        %v2060 = vmax.f32 %v1984, 0.0
        %v2061 = vmax.f32 %v1986, 0.0
        %v2062 = vmax.f32 %v1875, 0.0
        %v2063 = vmax.f32 %v1877, 0.0
        %v2064 = vmax.f32 %v1988, 0.0
        %v2065 = vmax.f32 %v1990, 0.0
        %v2066 = vmax.f32 %v1881, 0.0
        %v2067 = vmax.f32 %v1883, 0.0
        %v2068 = vmax.f32 %v1994, 0.0
        %v2069 = vmax.f32 %v1996, 0.0
        %v2070 = vmax.f32 %v1885, 0.0
        %v2071 = vmax.f32 %v1887, 0.0
        %v2072 = vmax.f32 %v1998, 0.0
        %v2073 = vmax.f32 %v2000, 0.0
        %v2074 = vmax.f32 %v1891, 0.0
        %v2075 = vmax.f32 %v1893, 0.0
        %v2076 = vmax.f32 %v2004, 0.0
        %v2077 = vmax.f32 %v2006, 0.0
        %v2078 = vmax.f32 %v1895, 0.0
        %v2079 = vmax.f32 %v1897, 0.0
        %v2080 = vmax.f32 %v2008, 0.0
        %v2081 = vmax.f32 %v2010, 0.0
        %v2082 = vmax.f32 %v1901, 0.0
        %v2083 = vmax.f32 %v1903, 0.0
        %v2084 = vmax.f32 %v2014, 0.0
        %v2085 = vmax.f32 %v2016, 0.0
        %v2086 = vmax.f32 %v1905, 0.0
        %v2087 = vmax.f32 %v1907, 0.0
        %v2088 = vmax.f32 %v2018, 0.0
        %v2089 = vmax.f32 %v2020, 0.0
        %v2090 = vmax.f32 %v1911, 0.0
        %v2091 = vmax.f32 %v1913, 0.0
        %v2092 = vmax.f32 %v2024, 0.0
        %v2093 = vmax.f32 %v2026, 0.0
        %v2094 = vmax.f32 %v1915, 0.0
        %v2095 = vmax.f32 %v1917, 0.0
        %v2096 = vmax.f32 %v2028, 0.0
        %v2097 = vmax.f32 %v2030, 0.0
        %v2098 = vmax.f32 %v1921, 0.0
        %v2099 = vmax.f32 %v1923, 0.0
        %v2100 = vmax.f32 %v2034, 0.0
        %v2101 = vmax.f32 %v2036, 0.0
        %v2102 = vmax.f32 %v1925, 0.0
        %v2103 = vmax.f32 %v1927, 0.0
        %v2104 = vmax.f32 %v2038, 0.0
        %v2105 = vmax.f32 %v2040, 0.0
        %v2106 = vpack.c.bf16 %v2046, %v2042
        %v2107 = vpack.c.bf16 %v2047, %v2043
        %v2108 = vpack.c.bf16 %v2048, %v2044
        %v2109 = vpack.c.bf16 %v2049, %v2045
        %v2110 = vpack.c.bf16 %v2054, %v2050
        %v2111 = vpack.c.bf16 %v2055, %v2051
        %v2112 = vpack.c.bf16 %v2056, %v2052
        %v2113 = vpack.c.bf16 %v2057, %v2053
        %v2114 = vpack.c.bf16 %v2062, %v2058
        %v2115 = vpack.c.bf16 %v2063, %v2059
        %v2116 = vpack.c.bf16 %v2064, %v2060
        %v2117 = vpack.c.bf16 %v2065, %v2061
        %v2118 = vpack.c.bf16 %v2070, %v2066
        %v2119 = vpack.c.bf16 %v2071, %v2067
        %v2120 = vpack.c.bf16 %v2072, %v2068
        %v2121 = vpack.c.bf16 %v2073, %v2069
        %v2122 = vpack.c.bf16 %v2078, %v2074
        %v2123 = vpack.c.bf16 %v2079, %v2075
        %v2124 = vpack.c.bf16 %v2080, %v2076
        %v2125 = vpack.c.bf16 %v2081, %v2077
        %v2126 = vpack.c.bf16 %v2086, %v2082
        %v2127 = vpack.c.bf16 %v2087, %v2083
        %v2128 = vpack.c.bf16 %v2088, %v2084
        %v2129 = vpack.c.bf16 %v2089, %v2085
        %v2130 = vpack.c.bf16 %v2094, %v2090
        %v2131 = vpack.c.bf16 %v2095, %v2091
        %v2132 = vpack.c.bf16 %v2096, %v2092
        %v2133 = vpack.c.bf16 %v2097, %v2093
        %v2134 = vpack.c.bf16 %v2102, %v2098
        %v2135 = vpack.c.bf16 %v2103, %v2099
        %v2136 = vpack.c.bf16 %v2104, %v2100
        %v2137 = vpack.c.bf16 %v2105, %v2101
        %v2138 = vld [vmem:[%s7] sm:$0xf]
        %v2139 = vld [vmem:[%s8] sm:$0xff]
        %2141 = vset.pattern.permute.xlu0 0
        %2142 = vperm.xlu0 %2141, %v2139
        %v2143 = vpop.permute.xlu0 %2142
        %2145 = vmatprep.subr.bf16.mxu0 %v2107
        %2146 = vmatpush1.bf16.msra.mxu0 %v2106
        %2147 = vmatprep.subr.bf16.mxu0 %v2111
        %2148 = vmatpush1.bf16.msra.mxu0 %v2110
        %2149 = vmatprep.subr.bf16.mxu0 %v2115
        %2150 = vmatpush1.bf16.msra.mxu0 %v2114
        %2151 = vmatprep.subr.bf16.mxu0 %v2119
        %2152 = vmatpush1.bf16.msra.mxu0 %v2118
        %2153 = vmatprep.subr.bf16.mxu0 %v2123
        %2154 = vmatpush1.bf16.msra.mxu0 %v2122
        %2155 = vmatprep.subr.bf16.mxu0 %v2127
        %2156 = vmatpush1.bf16.msra.mxu0 %v2126
        %2157 = vmatprep.subr.bf16.mxu0 %v2131
        %2158 = vmatpush1.bf16.msra.mxu0 %v2130
        %2159 = vmatprep.subr.bf16.mxu0 %v2135
        %2160 = vmatpush1.bf16.msra.mxu0 %v2134
        %2161 = vmatprep.subr.bf16.mxu0 0
        %2162 = vmatpush1.bf16.msra.mxu0 0
        %2163 = vmatprep.subr.bf16.mxu0 0
        %2164 = vmatpush1.bf16.msra.mxu0 0
        %2165 = vmatprep.subr.bf16.mxu0 0
        %2166 = vmatpush1.bf16.msra.mxu0 0
        %2167 = vmatprep.subr.bf16.mxu0 0
        %2168 = vmatpush1.bf16.msra.mxu0 0
        %2169 = vmatprep.subr.bf16.mxu0 0
        %2170 = vmatpush1.bf16.msra.mxu0 0
        %2171 = vmatprep.subr.bf16.mxu0 0
        %2172 = vmatpush1.bf16.msra.mxu0 0
        %2173 = vmatprep.subr.bf16.mxu0 0
        %2174 = vmatpush1.bf16.msra.mxu0 0
        %2175 = vmatprep.subr.bf16.mxu0 0
        %2176 = vmatpush1.bf16.msra.mxu0 0
        %2177 = vmatprep.mubr.bf16.mxu0 0
        %2178 = vmatmul.mubr.bf16.gmra.mrb[0].mxu0 %v2138
        %v2179 = vpop.f32.mrb[0].mxu0
        %v2180 = vadd.f32 %v2143, %v2179
        %v2181 = vpop.f32.mrb[0].mxu0
        %v2182 = vadd.f32 %v2143, %v2181
        %v2183 = vpop.f32.mrb[0].mxu0
        %v2184 = vpop.f32.mrb[0].mxu0
        %2185 = vdwg.mxu0
        %2186 = vmatprep.subr.bf16.mxu0 %v2109
        %2187 = vmatpush1.bf16.msra.mxu0 %v2108
        %2188 = vmatprep.subr.bf16.mxu0 %v2113
        %2189 = vmatpush1.bf16.msra.mxu0 %v2112
        %2190 = vmatprep.subr.bf16.mxu0 %v2117
        %2191 = vmatpush1.bf16.msra.mxu0 %v2116
        %2192 = vmatprep.subr.bf16.mxu0 %v2121
        %2193 = vmatpush1.bf16.msra.mxu0 %v2120
        %2194 = vmatprep.subr.bf16.mxu0 %v2125
        %2195 = vmatpush1.bf16.msra.mxu0 %v2124
        %2196 = vmatprep.subr.bf16.mxu0 %v2129
        %2197 = vmatpush1.bf16.msra.mxu0 %v2128
        %2198 = vmatprep.subr.bf16.mxu0 %v2133
        %2199 = vmatpush1.bf16.msra.mxu0 %v2132
        %2200 = vmatprep.subr.bf16.mxu0 %v2137
        %2201 = vmatpush1.bf16.msra.mxu0 %v2136
        %2202 = vmatprep.subr.bf16.mxu0 0
        %2203 = vmatpush1.bf16.msra.mxu0 0
        %2204 = vmatprep.subr.bf16.mxu0 0
        %2205 = vmatpush1.bf16.msra.mxu0 0
        %2206 = vmatprep.subr.bf16.mxu0 0
        %2207 = vmatpush1.bf16.msra.mxu0 0
        %2208 = vmatprep.subr.bf16.mxu0 0
        %2209 = vmatpush1.bf16.msra.mxu0 0
        %2210 = vmatprep.subr.bf16.mxu0 0
        %2211 = vmatpush1.bf16.msra.mxu0 0
        %2212 = vmatprep.subr.bf16.mxu0 0
        %2213 = vmatpush1.bf16.msra.mxu0 0
        %2214 = vmatprep.subr.bf16.mxu0 0
        %2215 = vmatpush1.bf16.msra.mxu0 0
        %2216 = vmatprep.subr.bf16.mxu0 0
        %2217 = vmatpush1.bf16.msra.mxu0 0
        %2218 = vmatprep.mubr.bf16.mxu0 0
        %2219 = vmatmul.mubr.bf16.gmra.mrb[0].mxu0 %v2138
        %v2220 = vpop.f32.mrb[0].mxu0
        %v2221 = vadd.f32 %v2143, %v2220
        %v2222 = vpop.f32.mrb[0].mxu0
        %v2223 = vadd.f32 %v2143, %v2222
        %v2224 = vpop.f32.mrb[0].mxu0
        %v2225 = vpop.f32.mrb[0].mxu0
        %2226 = vdwg.mxu0
        %v2227 = vtanh.pop %v2180
        %v2228 = vtanh.pop %v2182
        %v2229 = vtanh.pop %v2221
        %v2230 = vtanh.pop %v2223
        %2231 = vst [vmem:[%s338] sm:$0xff] %v2227
        %2232 = vst [vmem:[%s338 + $0x8] sm:$0xff] %v2228
        %2233 = vst [vmem:[%s338 + $0x10] sm:$0xff] %v2229
        %2234 = vst [vmem:[%s338 + $0x18] sm:$0xff] %v2230
        %s2235 = sand.u32 %s225, 1
        %s2236 = scalar_lea.sflag [#allocation3], %s2235
        %s2237 = sand.u32 %s225, 1
        %s2238 = smul.addr %s2237, 32
        %s2239 = scalar_lea.vmem [#allocation2], %s2238
        // Predicated region
        $region57: #{tpu_custom_call.1} parent=55 // pred_check
          %p2240 = pneg %p235
        $region58: #{tpu_custom_call.1} parent=55 // pred_check_branch
          %2242 = sbr.rel (%p2240) target = $region60
        $region59: #{tpu_custom_call.1} parent=55 // pred_region
          %s2243 = smul.u32 4, %s23
          %s2245 = ssub.s32 512, 512
          %2246 = vsyncadd %s2236, %s2245
          %s2247 = smul.addr %s2243, 128
          %s2248 = scalar_lea.hbm %s9, %s2247
          %s2250 = sshll.u32 %s2239, 4
          %s2251 = int_to_ptr.vmem [resolvable:$true] %s2250
          %2253 = dma.vmem_to_hbm [thread:$0]  %s2251, 512, %s2248, %s2236
        $region60: #{tpu_custom_call.1} parent=55 // pred_fallthru
          _
      $region56: #{tpu_custom_call.1} parent=5 // pred_fallthru
        _
      %p2254 = scmp.le.s32.totalorder 2, %s18
      // Predicated region
      $region61: #{tpu_custom_call.1} parent=5 // pred_check
        %p2255 = pneg %p2254
      $region62: #{tpu_custom_call.1} parent=5 // pred_check_branch
        %2257 = sbr.rel (%p2255) target = $region64
      $region63: #{tpu_custom_call.1} parent=5 // pred_region
        %s2258 = ssub.s32 %s18, 2
        // Predicated region
        $region65: #{tpu_custom_call.1} parent=63 // pred_check
          %p2259 = pneg %p241
        $region66: #{tpu_custom_call.1} parent=63 // pred_check_branch
          %2261 = sbr.rel (%p2259) target = $region68
        $region67: #{tpu_custom_call.1} parent=63 // pred_region
          %s2262 = sand.u32 %s226, 1
          %s2263 = scalar_lea.sflag [#allocation3], %s2262
          %s2264 = sand.u32 %s226, 1
          %s2265 = smul.addr %s2264, 32
          %s2266 = scalar_lea.vmem [#allocation2], %s2265
          %2267 = dma.done %s2263, 512
        $region68: #{tpu_custom_call.1} parent=63 // pred_fallthru
          _
      $region64: #{tpu_custom_call.1} parent=5 // pred_fallthru
        _
    $region6: #{tpu_custom_call.1} parent=1 // loop_footer
      %s22 = sadd.s32 1, %s18
    $region7: #{tpu_custom_call.1} parent=1 // loop_footer_branch
      %17 = sbr.rel target = $region3
    $region8: #{tpu_custom_call.1} parent=1 // loop_exit
      _
    %2268 = vsyncpa [#allocation3], 1
    %s2269 = scalar_lea.sflag [#allocation3], 1
    %2270 = vsyncpa %s2269, 1

</llo_original>
